<compile_context>
chip_gen: v6e
topology: v6e:2x2x1
jax: 0.10.0
libtpu: 0.0.40
codegen_flags: <defaults>
</compile_context>

<pallas_src>
import math

import jax
import jax.numpy as jnp
from jax.experimental import pallas as pl
from jax.experimental.pallas import tpu as pltpu

N_FFT = 512
HOP = 256                    # n_fft // 2 -> each frame is two consecutive hop rows
N_FREQ = N_FFT // 2 + 1      # 257 onesided bins
F_PAD = 384                  # 257 padded to 3 * 128 lanes
AMIN = 1e-10                 # torchaudio AmplitudeToDB clamp


def _loss_kernel(rows_ref, vad2_ref, dft_ref, out_ref):
    # rows_ref: [G, 2, Rpad, HOP]  f32 hop rows (signal 0 = pred, 1 = target)
    # vad2_ref: [G, Tpad, 1]       f32 squared VAD (zero on padded frames / padded items)
    # dft_ref:  [N_FFT, 2*F_PAD]   bf16 windowed DFT ([win*cos | -win*sin], freq padded)
    # out_ref:  [1, G, 1]          per-item losses for this group
    G, _, _, _ = rows_ref.shape
    Tpad = vad2_ref.shape[1]
    M = G * 2 * Tpad

    # Overlapping frames without duplicating data: frame t = [row t | row t+1].
    top = rows_ref[:, :, pl.ds(0, Tpad), :].reshape(M, HOP)
    bot = rows_ref[:, :, pl.ds(1, Tpad), :].reshape(M, HOP)

    w_top = dft_ref[pl.ds(0, HOP), :]            # weights for the first 256 samples of a frame
    w_bot = dft_ref[pl.ds(HOP, HOP), :]          # weights for the last 256 samples
    spec = (jnp.dot(top.astype(jnp.bfloat16), w_top, preferred_element_type=jnp.float32)
            + jnp.dot(bot.astype(jnp.bfloat16), w_bot, preferred_element_type=jnp.float32))

    re = spec[:, :F_PAD]                         # lane slices at 128-multiples
    im = spec[:, F_PAD:]
    power = re * re + im * im
    # ln instead of 10*log10: the final log-ratio loss is invariant to uniform dB scaling.
    db = jnp.log(jnp.maximum(power, AMIN))
    # Zero the padded frequency bins so they contribute nothing to the sums.
    fmask = jax.lax.broadcasted_iota(jnp.int32, (1, F_PAD), 1) < N_FREQ
    db = jnp.where(fmask, db, 0.0)

    db4 = db.reshape(G, 2, Tpad, F_PAD)
    dbp = db4[:, 0]                              # [G, Tpad, F_PAD] pred dB spectrum
    dbt = db4[:, 1]                              # [G, Tpad, F_PAD] target dB spectrum

    vad2 = vad2_ref[...]                         # [G, Tpad, 1]
    # VAD factored onto per-frame partial sums: sum_f first, then * vad^2, then sum_t.
    s_pt = jnp.sum(jnp.sum(dbp * dbt, axis=2, keepdims=True) * vad2, axis=1)   # [G, 1]
    s_pp = jnp.sum(jnp.sum(dbp * dbp, axis=2, keepdims=True) * vad2, axis=1)
    s_tt = jnp.sum(jnp.sum(dbt * dbt, axis=2, keepdims=True) * vad2, axis=1)

    # Well-conditioned residual (matches the PyTorch elementwise formulation):
    #   sum((st - alpha*sp)^2) = sum(vad^2 * (dbt - alpha*dbp)^2),  alpha = S_pt / S_pp
    alpha = (s_pt / s_pp).reshape(G, 1, 1)
    diff = dbt - alpha * dbp
    res = jnp.sum(jnp.sum(diff * diff, axis=2, keepdims=True) * vad2, axis=1)   # [G, 1]

    loss = 0.5 * jnp.log(res / s_tt)             # log(sqrt(res)/sqrt(s_tt))
    out_ref[...] = loss.reshape(1, G, 1)


def _dft_consts():
    """Hann-windowed onesided-DFT weights, bf16 [N_FFT, 2*F_PAD] = [win*cos | -win*sin | 0-pad]."""
    n = jnp.arange(N_FFT, dtype=jnp.int32)
    k = jnp.arange(N_FREQ, dtype=jnp.int32)
    nk = (n[:, None] * k[None, :]) % N_FFT                      # exact argument reduction
    ang = (2.0 * math.pi / N_FFT) * nk.astype(jnp.float32)
    nf = n.astype(jnp.float32)
    win = 0.5 - 0.5 * jnp.cos(2.0 * math.pi * nf / N_FFT)       # periodic Hann (torch.hann_window)
    cos_w = win[:, None] * jnp.cos(ang)                         # [N_FFT, N_FREQ]
    sin_w = -win[:, None] * jnp.sin(ang)
    padf = F_PAD - N_FREQ
    dft = jnp.concatenate([jnp.pad(cos_w, ((0, 0), (0, padf))),
                           jnp.pad(sin_w, ((0, 0), (0, padf)))], axis=1)   # [N_FFT, 2*F_PAD]
    return dft.astype(jnp.bfloat16)


def mse_with_va_loss(pred, target, target_vad, group_size=8):
    """pred/target: [B, num_spk, samples], target_vad: [B, num_spk, T_frames]."""
    B, S, L = pred.shape
    BS = B * S
    T = L // HOP + 1                              # center=True frame count
    assert target_vad.shape == (B, S, T), (target_vad.shape, (B, S, T))

    Tpad = ((T + 7) // 8) * 8                     # sublane-aligned frame axis
    Rpad = Tpad + 8                               # hop rows per signal (frame t needs rows t, t+1)

    # Honest per-item VMEM estimate (bytes): rows block, vad^2 block (lane-padded), bf16 matmul
    # operands, f32 spectrum, and db/product/diff temporaries.
    per_item = (
        2 * Rpad * HOP * 4 * 2          # f32 hop rows, double buffered
        + Tpad * 128 * 4 * 2            # vad^2 (last dim 1 -> padded to 128 lanes), double buffered
        + 2 * 2 * Tpad * HOP * 2        # bf16 top/bot operands
        + 2 * Tpad * 2 * F_PAD * 4      # f32 spectrum (re|im)
        + 3 * 2 * Tpad * F_PAD * 4      # power/db + product/diff temporaries
    )
    weights_bytes = 2 * N_FFT * 2 * F_PAD * 2     # bf16 DFT weights, double buffered
    budget = 40 * 1024 * 1024 - weights_bytes     # stays well under v7x's 64 MiB physical VMEM
    g_budget = max(1, budget // per_item)
    g_cap = BS // 2 if BS >= 2 else 1             # >=2 grid steps so both v7x TensorCores get work
    G = int(max(1, min(group_size, g_cap, g_budget)))
    num_groups = -(-BS // G)
    BS_pad = num_groups * G

    # Stack pred/target per item; padded items have zero VAD and are sliced off after the call.
    x = jnp.stack([pred.reshape(BS, L), target.reshape(BS, L)], axis=1).astype(jnp.float32)
    if BS_pad > BS:
        x = jnp.pad(x, ((0, BS_pad - BS), (0, 0), (0, 0)))
    x2 = x.reshape(BS_pad * 2, L)

    # center=True reflect padding + zero tail; hop rows are then a plain reshape (no gather,
    # no duplicated overlap samples).
    pad = N_FFT // 2
    xp = jnp.pad(x2, ((0, 0), (pad, pad)), mode="reflect")
    xp = jnp.pad(xp, ((0, 0), (0, Rpad * HOP - xp.shape[-1])))
    rows = xp.reshape(BS_pad, 2, Rpad, HOP)       # [BS_pad, 2, Rpad, HOP] f32

    vad = target_vad.reshape(BS, T).astype(jnp.float32)
    vad2 = jnp.pad(vad * vad, ((0, BS_pad - BS), (0, Tpad - T)))[:, :, None]   # [BS_pad, Tpad, 1]

    dft = _dft_consts()                           # [N_FFT, 2*F_PAD] bf16

    est_vmem = weights_bytes + per_item * G + (2 << 20)
    vmem_limit = int(min(56 * 1024 * 1024, max(32 * 1024 * 1024, int(est_vmem * 1.25))))

    out = pl.pallas_call(
        _loss_kernel,
        out_shape=jax.ShapeDtypeStruct((num_groups, G, 1), jnp.float32),
        grid_spec=pltpu.PrefetchScalarGridSpec(
            num_scalar_prefetch=0,
            grid=(num_groups,),
            in_specs=[
                pl.BlockSpec((G, 2, Rpad, HOP), lambda g: (g, 0, 0, 0)),   # hop rows
                pl.BlockSpec((G, Tpad, 1), lambda g: (g, 0, 0)),           # squared VAD
                pl.BlockSpec((N_FFT, 2 * F_PAD), lambda g: (0, 0)),        # windowed DFT (const)
            ],
            out_specs=pl.BlockSpec((1, G, 1), lambda g: (g, 0, 0)),        # per-item losses
        ),
        compiler_params=pltpu.CompilerParams(
            dimension_semantics=("parallel",),
            vmem_limit_bytes=vmem_limit),
    )(rows, vad2, dft)

    losses = out.reshape(-1)[:BS]                 # drop padded items (NaN from 0/0) before the mean
    return jnp.mean(losses)


def _reference_loss(pred, target, target_vad):
    """Pure-JAX f32 mirror of the PyTorch forward (independent path, for validation)."""
    B, S, L = pred.shape
    T = L // HOP + 1
    n = jnp.arange(N_FFT, dtype=jnp.float32)
    k = jnp.arange(N_FREQ, dtype=jnp.float32)
    ang = 2.0 * math.pi * n[:, None] * k[None, :] / N_FFT
    cos_m = jnp.cos(ang)
    sin_m = -jnp.sin(ang)
    win = 0.5 - 0.5 * jnp.cos(2.0 * math.pi * n / N_FFT)

    def db_spec(x):
        xf = x.reshape(B * S, L).astype(jnp.float32)
        xp = jnp.pad(xf, ((0, 0), (N_FFT // 2, N_FFT // 2)), mode="reflect")
        idx = jnp.arange(T)[:, None] * HOP + jnp.arange(N_FFT)[None, :]
        fr = xp[:, idx] * win[None, None, :]
        re = fr @ cos_m
        im = fr @ sin_m
        pw = re * re + im * im
        return (10.0 * jnp.log10(jnp.maximum(pw, AMIN))).reshape(B, S, T, N_FREQ)

    vad = target_vad.astype(jnp.float32)[..., None]
    sp = db_spec(pred) * vad
    st = db_spec(target) * vad
    alpha = jnp.sum(sp * st, axis=(2, 3), keepdims=True) / jnp.sum(
        sp * sp, axis=(2, 3), keepdims=True)
    spa = sp * alpha
    eng = jnp.sqrt(jnp.sum(st * st, axis=(2, 3)))
    return jnp.mean(jnp.log(jnp.sqrt(jnp.sum((st - spa) ** 2, axis=(2, 3))) / eng))


if __name__ == "__main__":
    B, NUM_SPK, SAMPLES = 2, 2, 1024
    T_FRAMES = SAMPLES // HOP + 1  # center=True -> 5 frames

    key = jax.random.PRNGKey(0)
    k1, k2, k3 = jax.random.split(key, 3)
    pred = jax.random.normal(k1, (B, NUM_SPK, SAMPLES), dtype=jnp.float32)
    target = jax.random.normal(k2, (B, NUM_SPK, SAMPLES), dtype=jnp.float32)
    vad = (jax.random.uniform(k3, (B, NUM_SPK, T_FRAMES)) > 0.3).astype(jnp.float32)
    vad = vad.at[..., 0].set(1.0)  # guarantee at least one active frame per item

    loss = jax.block_until_ready(mse_with_va_loss(pred, target, vad))
    ref = jax.block_until_ready(_reference_loss(pred, target, vad))

    assert jnp.isfinite(loss), loss
    assert jnp.allclose(loss, ref, rtol=5e-3, atol=5e-3), (loss, ref)
    print("KERNEL_OK")
</pallas_src>

<mosaic_0001>
module attributes {stable_mosaic.version = 11 : i64} {
  func.func @_loss_kernel(%arg0: i32, %arg1: memref<2x2x16x256xf32, #tpu.memory_space<vmem>>, %arg2: memref<2x8x1xf32, #tpu.memory_space<vmem>>, %arg3: memref<512x768xbf16, #tpu.memory_space<vmem>>, %arg4: memref<1x2x1xf32, #tpu.memory_space<vmem>>) attributes {dimension_semantics = [#tpu.dimension_semantics<parallel>], iteration_bounds = array<i64: 2>, scalar_prefetch = 0 : i64, scratch_operands = 0 : i64, tpu.core_type = #tpu.core_type<tc>, window_params = [{transform_indices = @transform_0, window_bounds = array<i64: 2, 2, 16, 256>}, {transform_indices = @transform_1, window_bounds = array<i64: 2, 8, 1>}, {pipeline_mode = #tpu.pipeline_mode<synchronous>, transform_indices = @transform_2, window_bounds = array<i64: 512, 768>}, {transform_indices = @transform_3, window_bounds = array<i64: 1, 2, 1>}]} {
    %c0 = arith.constant 0 : index
    %c0_0 = arith.constant 0 : index
    %c0_1 = arith.constant 0 : index
    %c0_2 = arith.constant 0 : index
    %0 = vector.load %arg1[%c0, %c0_0, %c0_1, %c0_2] : memref<2x2x16x256xf32, #tpu.memory_space<vmem>>, vector<2x2x8x256xf32>
    %1 = vector.shape_cast %0 : vector<2x2x8x256xf32> to vector<32x256xf32>
    %c0_3 = arith.constant 0 : index
    %c0_4 = arith.constant 0 : index
    %c1 = arith.constant 1 : index
    %c0_5 = arith.constant 0 : index
    %2 = vector.load %arg1[%c0_3, %c0_4, %c1, %c0_5] : memref<2x2x16x256xf32, #tpu.memory_space<vmem>>, vector<2x2x8x256xf32>
    %3 = vector.shape_cast %2 : vector<2x2x8x256xf32> to vector<32x256xf32>
    %c0_6 = arith.constant 0 : index
    %c0_7 = arith.constant 0 : index
    %4 = vector.load %arg3[%c0_6, %c0_7] : memref<512x768xbf16, #tpu.memory_space<vmem>>, vector<256x768xbf16>
    %c256 = arith.constant 256 : index
    %c0_8 = arith.constant 0 : index
    %5 = vector.load %arg3[%c256, %c0_8] : memref<512x768xbf16, #tpu.memory_space<vmem>>, vector<256x768xbf16>
    %6 = arith.truncf %1 : vector<32x256xf32> to vector<32x256xbf16>
    %cst = arith.constant dense<0.000000e+00> : vector<32x768xf32>
    %7 = tpu.matmul %6, %4, %cst {dimension_numbers = #tpu.dot_dimension_numbers<[1], [0], [0], [1], [0, 0, 1, 1], [], []>} : vector<32x256xbf16>, vector<256x768xbf16>, vector<32x768xf32> -> vector<32x768xf32>
    %8 = arith.truncf %3 : vector<32x256xf32> to vector<32x256xbf16>
    %cst_9 = arith.constant dense<0.000000e+00> : vector<32x768xf32>
    %9 = tpu.matmul %8, %5, %cst_9 {dimension_numbers = #tpu.dot_dimension_numbers<[1], [0], [0], [1], [0, 0, 1, 1], [], []>} : vector<32x256xbf16>, vector<256x768xbf16>, vector<32x768xf32> -> vector<32x768xf32>
    %10 = arith.addf %7, %9 : vector<32x768xf32>
    %11 = vector.extract_strided_slice %10 {offsets = [0, 0], sizes = [32, 384], strides = [1, 1]} : vector<32x768xf32> to vector<32x384xf32>
    %12 = vector.extract_strided_slice %10 {offsets = [0, 384], sizes = [32, 384], strides = [1, 1]} : vector<32x768xf32> to vector<32x384xf32>
    %13 = arith.mulf %11, %11 : vector<32x384xf32>
    %14 = arith.mulf %12, %12 : vector<32x384xf32>
    %15 = arith.addf %13, %14 : vector<32x384xf32>
    %cst_10 = arith.constant 1.000000e-10 : f32
    %16 = vector.broadcast %cst_10 : f32 to vector<32x384xf32>
    %17 = arith.maximumf %15, %16 : vector<32x384xf32>
    %18 = math.log %17 : vector<32x384xf32>
    %19 = tpu.iota {dimensions = array<i32: 1>} : vector<1x384xi32>
    %c257_i32 = arith.constant 257 : i32
    %20 = vector.broadcast %c257_i32 : i32 to vector<1x384xi32>
    %21 = arith.cmpi slt, %19, %20 : vector<1x384xi32>
    %cst_11 = arith.constant 0.000000e+00 : f32
    %22 = vector.shape_cast %21 : vector<1x384xi1> to vector<1x384xi1>
    %23 = vector.broadcast %22 : vector<1x384xi1> to vector<32x384xi1>
    %24 = vector.broadcast %cst_11 : f32 to vector<32x384xf32>
    %25 = arith.select %23, %18, %24 : vector<32x384xi1>, vector<32x384xf32>
    %26 = vector.shape_cast %25 : vector<32x384xf32> to vector<2x2x8x384xf32>
    %27 = vector.extract_strided_slice %26 {offsets = [0, 0, 0, 0], sizes = [2, 1, 8, 384], strides = [1, 1, 1, 1]} : vector<2x2x8x384xf32> to vector<2x1x8x384xf32>
    %28 = vector.shape_cast %27 : vector<2x1x8x384xf32> to vector<2x8x384xf32>
    %29 = vector.extract_strided_slice %26 {offsets = [0, 1, 0, 0], sizes = [2, 1, 8, 384], strides = [1, 1, 1, 1]} : vector<2x2x8x384xf32> to vector<2x1x8x384xf32>
    %30 = vector.shape_cast %29 : vector<2x1x8x384xf32> to vector<2x8x384xf32>
    %c0_12 = arith.constant 0 : index
    %c0_13 = arith.constant 0 : index
    %c0_14 = arith.constant 0 : index
    %31 = vector.load %arg2[%c0_12, %c0_13, %c0_14] : memref<2x8x1xf32, #tpu.memory_space<vmem>>, vector<2x8x1xf32>
    %32 = arith.mulf %28, %30 : vector<2x8x384xf32>
    %cst_15 = arith.constant dense<0.000000e+00> : vector<2x8xf32>
    %33 = vector.multi_reduction <add>, %32, %cst_15 [2] : vector<2x8x384xf32> to vector<2x8xf32>
    %34 = vector.shape_cast %33 : vector<2x8xf32> to vector<2x8x1xf32>
    %35 = arith.mulf %34, %31 : vector<2x8x1xf32>
    %cst_16 = arith.constant dense<0.000000e+00> : vector<2x1xf32>
    %36 = vector.multi_reduction <add>, %35, %cst_16 [1] : vector<2x8x1xf32> to vector<2x1xf32>
    %37 = arith.mulf %28, %28 : vector<2x8x384xf32>
    %cst_17 = arith.constant dense<0.000000e+00> : vector<2x8xf32>
    %38 = vector.multi_reduction <add>, %37, %cst_17 [2] : vector<2x8x384xf32> to vector<2x8xf32>
    %39 = vector.shape_cast %38 : vector<2x8xf32> to vector<2x8x1xf32>
    %40 = arith.mulf %39, %31 : vector<2x8x1xf32>
    %cst_18 = arith.constant dense<0.000000e+00> : vector<2x1xf32>
    %41 = vector.multi_reduction <add>, %40, %cst_18 [1] : vector<2x8x1xf32> to vector<2x1xf32>
    %42 = arith.mulf %30, %30 : vector<2x8x384xf32>
    %cst_19 = arith.constant dense<0.000000e+00> : vector<2x8xf32>
    %43 = vector.multi_reduction <add>, %42, %cst_19 [2] : vector<2x8x384xf32> to vector<2x8xf32>
    %44 = vector.shape_cast %43 : vector<2x8xf32> to vector<2x8x1xf32>
    %45 = arith.mulf %44, %31 : vector<2x8x1xf32>
    %cst_20 = arith.constant dense<0.000000e+00> : vector<2x1xf32>
    %46 = vector.multi_reduction <add>, %45, %cst_20 [1] : vector<2x8x1xf32> to vector<2x1xf32>
    %47 = arith.divf %36, %41 : vector<2x1xf32>
    %48 = vector.shape_cast %47 : vector<2x1xf32> to vector<2x1x1xf32>
    %49 = vector.broadcast %48 : vector<2x1x1xf32> to vector<2x8x384xf32>
    %50 = arith.mulf %49, %28 : vector<2x8x384xf32>
    %51 = arith.subf %30, %50 : vector<2x8x384xf32>
    %52 = arith.mulf %51, %51 : vector<2x8x384xf32>
    %cst_21 = arith.constant dense<0.000000e+00> : vector<2x8xf32>
    %53 = vector.multi_reduction <add>, %52, %cst_21 [2] : vector<2x8x384xf32> to vector<2x8xf32>
    %54 = vector.shape_cast %53 : vector<2x8xf32> to vector<2x8x1xf32>
    %55 = arith.mulf %54, %31 : vector<2x8x1xf32>
    %cst_22 = arith.constant dense<0.000000e+00> : vector<2x1xf32>
    %56 = vector.multi_reduction <add>, %55, %cst_22 [1] : vector<2x8x1xf32> to vector<2x1xf32>
    %57 = arith.divf %56, %46 : vector<2x1xf32>
    %58 = math.log %57 : vector<2x1xf32>
    %cst_23 = arith.constant 5.000000e-01 : f32
    %59 = vector.broadcast %cst_23 : f32 to vector<2x1xf32>
    %60 = arith.mulf %59, %58 : vector<2x1xf32>
    %61 = vector.shape_cast %60 : vector<2x1xf32> to vector<1x2x1xf32>
    %c0_24 = arith.constant 0 : index
    %c0_25 = arith.constant 0 : index
    %c0_26 = arith.constant 0 : index
    %62 = vector.load %arg4[%c0_24, %c0_25, %c0_26] : memref<1x2x1xf32, #tpu.memory_space<vmem>>, vector<1x2x1xf32>
    tpu.vector_store %arg4[%c0_24, %c0_25, %c0_26], %61 {strides = array<i32>} : memref<1x2x1xf32, #tpu.memory_space<vmem>>, vector<1x2x1xf32>,
    return
  }
  func.func @transform_0(%arg0: i32) -> (i32, i32, i32, i32) {
    %c0_i32 = arith.constant 0 : i32
    %c0_i32_0 = arith.constant 0 : i32
    %c0_i32_1 = arith.constant 0 : i32
    %c0_i32_2 = arith.constant 0 : i32
    return %arg0, %c0_i32, %c0_i32_0, %c0_i32_1 : i32, i32, i32, i32
  }
  func.func @transform_1(%arg0: i32) -> (i32, i32, i32) {
    %c0_i32 = arith.constant 0 : i32
    %c0_i32_0 = arith.constant 0 : i32
    %c0_i32_1 = arith.constant 0 : i32
    return %arg0, %c0_i32, %c0_i32_0 : i32, i32, i32
  }
  func.func @transform_2(%arg0: i32) -> (i32, i32) {
    %c0_i32 = arith.constant 0 : i32
    %c0_i32_0 = arith.constant 0 : i32
    %c0_i32_1 = arith.constant 0 : i32
    return %c0_i32, %c0_i32_0 : i32, i32
  }
  func.func @transform_3(%arg0: i32) -> (i32, i32, i32) {
    %c0_i32 = arith.constant 0 : i32
    %c0_i32_0 = arith.constant 0 : i32
    %c0_i32_1 = arith.constant 0 : i32
    return %arg0, %c0_i32, %c0_i32_0 : i32, i32, i32
  }
}

</mosaic_0001>

<llo_original>
// kernel: tpu_custom_call.1
$region0: #{tpu_custom_call.1}
  #allocation0 [shape = 'u32[]', space=smem, size = 0x4, offset = 0x4, fixed_abs, tag = 'smem constant byte address 0x4 - core index']
  #allocation1 [shape = 'u32[144,128]{1,0:T(1,128)}', space=vmem, size = 0x12000, scoped, tag = 'internal scratch']
  %s0 = inlined_call_operand.hbm [shape: f32[4,2,16,256], index: 0, kind: input, shape index: {}]
  %s1 = inlined_call_operand.vmem [shape: f32[4,8,1], index: 1, kind: input, shape index: {}]
  %s2 = inlined_call_operand.hbm [shape: bf16[512,768], index: 2, kind: input, shape index: {}]
  %s3 = inlined_call_operand.vmem [shape: f32[2,2,1], index: 3, kind: output, shape index: {}]
  %s4 = sld [smem:[#allocation0]]
  $region53: #{tpu_custom_call.1} parent=0
    _
  %s6 = ssub.s32 1, %s4
  %s7 = scalar_select 0, %s6, %s4
  $region1: #{tpu_custom_call.1} parent=0
    #allocation2 [shape = 'u8[131072]{0}', space=vmem, size = 0x20000, scoped, tag = 'input window, operand 0']
    #allocation3 [shape = 's32[2]{0}', space=sflag, size = 0x8, scoped, tag = 'scoped memory for tpu_custom_call.1']
    #allocation4 [shape = 'u8[786432]{0}', space=vmem, size = 0xc0000, scoped, tag = 'input window, operand 2, single buffered']
    #allocation5 [shape = 's32[1]{0}', space=sflag, size = 0x4, scoped, tag = 'scoped memory for tpu_custom_call.1']
    %8 = vsyncpa [#allocation3], 0
    %s9 = scalar_lea.sflag [#allocation3], 1
    %10 = vsyncpa %s9, 0
    %11 = vsyncpa [#allocation5], 0
    loop: start=0, step=1, limit=4
    $region2: #{tpu_custom_call.1} parent=1 // loop_pre_header
      _
    $region3: #{tpu_custom_call.1} parent=1 // loop_header
      %s13 = sphi 0, %s17
      %p14 = scmp.ge.s32.totalorder %s13, 4
      %s23 = sphi 0, %s25
      %s26 = sphi 0, %s23
      %s27 = sphi 0, %s26
      %s43 = sphi 0, %s27
      %s49 = sphi 0, %s51
      %s52 = sphi 0, %s49
      %s53 = sphi 0, %s52
      %s69 = sphi 0, %s53
      %s73 = sphi 0, %s73
      %s75 = sphi 0, %s73
      %s76 = sphi 0, %s75
      %s90 = sphi 0, %s76
      %s96 = sphi 0, %s98
      %s99 = sphi 0, %s96
      %s100 = sphi 0, %s99
      %s116 = sphi 0, %s100
    $region4: #{tpu_custom_call.1} parent=1 // loop_header_branch
      %16 = sbr.rel (%p14) target = $region8
    $region5: #{tpu_custom_call.1} parent=1 // loop_body
      %s18 = ssub.s32 %s13, 1
      %s19 = ssub.s32 %s13, 2
      %s20 = sadd.s32 %s13, 1
      %s21 = ssub.s32 %s13, %s20
      %p22 = scmp.eq.s32.totalorder %s21, 0
      %s24 = sadd.s32 %s23, 1
      %s25 = scalar_select %p22, %s23, %s24
      %p28 = pneg %p22
      %p29 = scmp.eq.s32.totalorder %s13, 1
      %p30 = por %p28, %p29
      %p31 = scmp.ne.s32.totalorder %s23, %s26
      %p32 = scmp.eq.s32.totalorder %s13, 0
      %p33 = por %p31, %p32
      %p34 = scmp.ne.s32.totalorder %s23, %s26
      %p35 = scmp.eq.s32.totalorder %s18, 1
      %p36 = por %p34, %p35
      %p37 = scmp.ne.s32.totalorder %s26, %s27
      %p38 = scmp.eq.s32.totalorder %s18, 0
      %p39 = por %p37, %p38
      %p40 = scmp.ne.s32.totalorder %s26, %s27
      %p41 = scmp.eq.s32.totalorder %s19, 1
      %p42 = por %p40, %p41
      %p44 = scmp.ne.s32.totalorder %s27, %s43
      %p45 = scmp.eq.s32.totalorder %s19, 0
      %p46 = por %p44, %p45
      %s47 = ssub.s32 %s13, %s20
      %p48 = scmp.eq.s32.totalorder %s47, 0
      %s50 = sadd.s32 %s49, 1
      %s51 = scalar_select %p48, %s49, %s50
      %p54 = pneg %p48
      %p55 = scmp.eq.s32.totalorder %s13, 1
      %p56 = por %p54, %p55
      %p57 = scmp.ne.s32.totalorder %s49, %s52
      %p58 = scmp.eq.s32.totalorder %s13, 0
      %p59 = por %p57, %p58
      %p60 = scmp.ne.s32.totalorder %s49, %s52
      %p61 = scmp.eq.s32.totalorder %s18, 1
      %p62 = por %p60, %p61
      %p63 = scmp.ne.s32.totalorder %s52, %s53
      %p64 = scmp.eq.s32.totalorder %s18, 0
      %p65 = por %p63, %p64
      %p66 = scmp.ne.s32.totalorder %s52, %s53
      %p67 = scmp.eq.s32.totalorder %s19, 1
      %p68 = por %p66, %p67
      %p70 = scmp.ne.s32.totalorder %s53, %s69
      %p71 = scmp.eq.s32.totalorder %s19, 0
      %p72 = por %p70, %p71
      %s74 = sadd.s32 %s73, 1
      %p77 = scmp.eq.s32.totalorder %s13, 1
      %p78 = scmp.ne.s32.totalorder %s73, %s75
      %p79 = scmp.eq.s32.totalorder %s13, 0
      %p80 = por %p78, %p79
      %p81 = scmp.ne.s32.totalorder %s73, %s75
      %p82 = scmp.eq.s32.totalorder %s18, 1
      %p83 = por %p81, %p82
      %p84 = scmp.ne.s32.totalorder %s75, %s76
      %p85 = scmp.eq.s32.totalorder %s18, 0
      %p86 = por %p84, %p85
      %p87 = scmp.ne.s32.totalorder %s75, %s76
      %p88 = scmp.eq.s32.totalorder %s19, 1
      %p89 = por %p87, %p88
      %p91 = scmp.ne.s32.totalorder %s76, %s90
      %p92 = scmp.eq.s32.totalorder %s19, 0
      %p93 = por %p91, %p92
      %s94 = ssub.s32 %s13, %s20
      %p95 = scmp.eq.s32.totalorder %s94, 0
      %s97 = sadd.s32 %s96, 1
      %s98 = scalar_select %p95, %s96, %s97
      %p101 = pneg %p95
      %p102 = scmp.eq.s32.totalorder %s13, 1
      %p103 = por %p101, %p102
      %p104 = scmp.ne.s32.totalorder %s96, %s99
      %p105 = scmp.eq.s32.totalorder %s13, 0
      %p106 = por %p104, %p105
      %p107 = scmp.ne.s32.totalorder %s96, %s99
      %p108 = scmp.eq.s32.totalorder %s18, 1
      %p109 = por %p107, %p108
      %p110 = scmp.ne.s32.totalorder %s99, %s100
      %p111 = scmp.eq.s32.totalorder %s18, 0
      %p112 = por %p110, %p111
      %p113 = scmp.ne.s32.totalorder %s99, %s100
      %p114 = scmp.eq.s32.totalorder %s19, 1
      %p115 = por %p113, %p114
      %p117 = scmp.ne.s32.totalorder %s100, %s116
      %p118 = scmp.eq.s32.totalorder %s19, 0
      %p119 = por %p117, %p118
      %p120 = scmp.le.s32.totalorder 1, %s13
      %p121 = scmp.lt.s32.totalorder %s13, 3
      %p122 = pnand %p120, %p121
      %p123 = pneg %p122
      // Predicated region
      $region9: #{tpu_custom_call.1} parent=5 // pred_check
        _
      $region10: #{tpu_custom_call.1} parent=5 // pred_check_branch
        %125 = sbr.rel (%p122) target = $region12
      $region11: #{tpu_custom_call.1} parent=5 // pred_region
        %s126 = ssub.s32 %s13, 1
        // Predicated region
        $region13: #{tpu_custom_call.1} parent=11 // pred_check
          %p127 = pneg %p86
        $region14: #{tpu_custom_call.1} parent=11 // pred_check_branch
          %129 = sbr.rel (%p127) target = $region16
        $region15: #{tpu_custom_call.1} parent=11 // pred_region
          %s131 = ssub.s32 24576, 24576
          %132 = vsyncadd [#allocation5], %s131
          %s133 = sshll.u32 [#allocation4], 4
          %s134 = int_to_ptr.vmem [resolvable:$true] %s133
          %139 = dma.hbm_to_vmem [thread:$0]  %s2, 24576, %s134, [#allocation5], 384, 384, 24
        $region16: #{tpu_custom_call.1} parent=11 // pred_fallthru
          _
      $region12: #{tpu_custom_call.1} parent=5 // pred_fallthru
        _
      %p140 = scmp.lt.s32.totalorder %s13, 2
      // Predicated region
      $region17: #{tpu_custom_call.1} parent=5 // pred_check
        %p141 = pneg %p140
      $region18: #{tpu_custom_call.1} parent=5 // pred_check_branch
        %143 = sbr.rel (%p141) target = $region20
      $region19: #{tpu_custom_call.1} parent=5 // pred_region
        // Predicated region
        $region21: #{tpu_custom_call.1} parent=19 // pred_check
          %p144 = pneg %p33
        $region22: #{tpu_custom_call.1} parent=19 // pred_check_branch
          %146 = sbr.rel (%p144) target = $region24
        $region23: #{tpu_custom_call.1} parent=19 // pred_region
          %s147 = sand.u32 %s23, 1
          %s148 = scalar_lea.sflag [#allocation3], %s147
          %s149 = sand.u32 %s23, 1
          %s150 = smul.addr %s149, 128
          %s151 = scalar_lea.vmem [#allocation2], %s150
          %s152 = smul.u32 2, %s13
          %s154 = ssub.s32 2048, 2048
          %155 = vsyncadd %s148, %s154
          %s156 = smul.addr %s152, 8
          %s157 = smul.addr %s156, 128
          %s158 = scalar_lea.hbm %s0, %s157
          %s159 = sshll.u32 %s151, 4
          %s160 = int_to_ptr.vmem [resolvable:$true] %s159
          %165 = dma.hbm_to_vmem [thread:$0]  %s158, 2048, %s160, %s148, 256, 256, 16
        $region24: #{tpu_custom_call.1} parent=19 // pred_fallthru
          _
        // Predicated region
        $region25: #{tpu_custom_call.1} parent=19 // pred_check
          %p166 = pneg %p59
        $region26: #{tpu_custom_call.1} parent=19 // pred_check_branch
          %168 = sbr.rel (%p166) target = $region28
        $region27: #{tpu_custom_call.1} parent=19 // pred_region
          %s169 = smul.u32 2, %s13
          %p170 = scmp.lt.s32.totalorder %s169, 3
          %s171 = scalar_select %p170, %s169, 3
          %s172 = smul.addr %s171, 8
          %s173 = scalar_lea.vmem %s1, %s172
          %s174 = smul.u32 2, %s13
        $region28: #{tpu_custom_call.1} parent=19 // pred_fallthru
          _
      $region20: #{tpu_custom_call.1} parent=5 // pred_fallthru
        _
      %p175 = scmp.le.s32.totalorder 1, %s13
      %p176 = scmp.lt.s32.totalorder %s13, 3
      %p177 = pnand %p175, %p176
      %p178 = pneg %p177
      // Predicated region
      $region29: #{tpu_custom_call.1} parent=5 // pred_check
        _
      $region30: #{tpu_custom_call.1} parent=5 // pred_check_branch
        %180 = sbr.rel (%p177) target = $region32
      $region31: #{tpu_custom_call.1} parent=5 // pred_region
        %s181 = ssub.s32 %s13, 1
        %s182 = sand.u32 %s26, 1
        %s183 = scalar_lea.sflag [#allocation3], %s182
        %s184 = sand.u32 %s26, 1
        %s185 = smul.addr %s184, 128
        %s186 = scalar_lea.vmem [#allocation2], %s185
        // Predicated region
        $region33: #{tpu_custom_call.1} parent=31 // pred_check
          %p187 = pneg %p39
        $region34: #{tpu_custom_call.1} parent=31 // pred_check_branch
          %189 = sbr.rel (%p187) target = $region36
        $region35: #{tpu_custom_call.1} parent=31 // pred_region
          %190 = dma.done %s183, 2048
        $region36: #{tpu_custom_call.1} parent=31 // pred_fallthru
          _
        // Predicated region
        $region37: #{tpu_custom_call.1} parent=31 // pred_check
          %p191 = pneg %p86
        $region38: #{tpu_custom_call.1} parent=31 // pred_check_branch
          %193 = sbr.rel (%p191) target = $region40
        $region39: #{tpu_custom_call.1} parent=31 // pred_region
          %194 = dma.done [#allocation5], 24576
        $region40: #{tpu_custom_call.1} parent=31 // pred_fallthru
          _
        %s195 = sand.u32 %s26, 1
        %s196 = scalar_lea.sflag [#allocation3], %s195
        %s197 = sand.u32 %s26, 1
        %s198 = smul.addr %s197, 128
        %s199 = scalar_lea.vmem [#allocation2], %s198
        %p200 = pneg %p39
        %p201 = pneg %p36
        %s202 = smul.u32 2, %s18
        %p203 = scmp.lt.s32.totalorder %s202, 3
        %s204 = scalar_select %p203, %s202, 3
        %s205 = smul.addr %s204, 8
        %s206 = scalar_lea.vmem %s1, %s205
        %p207 = pneg %p65
        %p208 = pneg %p62
        %p209 = pneg %p86
        %p210 = pneg %p83
        %p211 = pneg %p112
        %p212 = pneg %p109
        %p213 = scmp.lt.s32.totalorder %s18, 1
        %s214 = scalar_select %p213, %s18, 1
        %s215 = smul.addr %s214, 2
        %s216 = scalar_lea.vmem %s3, %s215
        %s217 = smul.u32 2, %s18
        %s218 = smul.u32 2, %s18
        %p219 = scmp.lt.s32.totalorder %s218, 3
        %s220 = scalar_select %p219, %s218, 3
        %s221 = smul.addr %s220, 8
        %s222 = scalar_lea.vmem %s1, %s221
        %s223 = smul.u32 2, %s18
        %p224 = scmp.lt.s32.totalorder %s18, 1
        %s225 = scalar_select %p224, %s18, 1
        %s226 = smul.addr %s225, 2
        %s227 = scalar_lea.vmem %s3, %s226
        %v228 = vld [vmem:[%s186] sm:$0xff]
        %v229 = vld [vmem:[%s186 + $0x8] sm:$0xff]
        %v230 = vld [vmem:[%s186 + $0x20] sm:$0xff]
        %v231 = vld [vmem:[%s186 + $0x28] sm:$0xff]
        %v232 = vld [vmem:[%s186 + $0x40] sm:$0xff]
        %v233 = vld [vmem:[%s186 + $0x48] sm:$0xff]
        %v234 = vld [vmem:[%s186 + $0x60] sm:$0xff]
        %v235 = vld [vmem:[%s186 + $0x68] sm:$0xff]
        %v236 = vld [vmem:[%s186] sm:$0xfe]
        %v237 = vld [vmem:[%s186 + $0x8] sm:$0xfe]
        %v238 = vld [vmem:[%s186 + $0x10] sm:$0x1]
        %v239 = vld [vmem:[%s186 + $0x18] sm:$0x1]
        %v240 = vld [vmem:[%s186 + $0x20] sm:$0xfe]
        %v241 = vld [vmem:[%s186 + $0x28] sm:$0xfe]
        %v242 = vld [vmem:[%s186 + $0x30] sm:$0x1]
        %v243 = vld [vmem:[%s186 + $0x38] sm:$0x1]
        %v244 = vld [vmem:[%s186 + $0x40] sm:$0xfe]
        %v245 = vld [vmem:[%s186 + $0x48] sm:$0xfe]
        %v246 = vld [vmem:[%s186 + $0x50] sm:$0x1]
        %v247 = vld [vmem:[%s186 + $0x58] sm:$0x1]
        %v248 = vld [vmem:[%s186 + $0x60] sm:$0xfe]
        %v249 = vld [vmem:[%s186 + $0x68] sm:$0xfe]
        %v250 = vld [vmem:[%s186 + $0x70] sm:$0x1]
        %v251 = vld [vmem:[%s186 + $0x78] sm:$0x1]
        %vm268 = vcmask 1046528
        %v269 = vrot.slane %v236, 1
        %v270 = vrot.slane %v238, 1
        %v271 = vsel %vm268, %v269, %v270
        %v272 = vrot.slane %v237, 1
        %v273 = vrot.slane %v239, 1
        %v274 = vsel %vm268, %v272, %v273
        %v275 = vrot.slane %v240, 1
        %v276 = vrot.slane %v242, 1
        %v277 = vsel %vm268, %v275, %v276
        %v278 = vrot.slane %v241, 1
        %v279 = vrot.slane %v243, 1
        %v280 = vsel %vm268, %v278, %v279
        %v281 = vrot.slane %v244, 1
        %v282 = vrot.slane %v246, 1
        %v283 = vsel %vm268, %v281, %v282
        %v284 = vrot.slane %v245, 1
        %v285 = vrot.slane %v247, 1
        %v286 = vsel %vm268, %v284, %v285
        %v287 = vrot.slane %v248, 1
        %v288 = vrot.slane %v250, 1
        %v289 = vsel %vm268, %v287, %v288
        %v290 = vrot.slane %v249, 1
        %v291 = vrot.slane %v251, 1
        %v292 = vsel %vm268, %v290, %v291
        %v301 = vld [vmem:[#allocation4] sm:$0xff]
        %v302 = vld [vmem:[#allocation4 + $0x8] sm:$0xff]
        %v303 = vld [vmem:[#allocation4 + $0x10] sm:$0xff]
        %v304 = vld [vmem:[#allocation4 + $0x18] sm:$0xff]
        %v305 = vld [vmem:[#allocation4 + $0x20] sm:$0xff]
        %v306 = vld [vmem:[#allocation4 + $0x28] sm:$0xff]
        %v307 = vld [vmem:[#allocation4 + $0x30] sm:$0xff]
        %v308 = vld [vmem:[#allocation4 + $0x38] sm:$0xff]
        %v309 = vld [vmem:[#allocation4 + $0x40] sm:$0xff]
        %v310 = vld [vmem:[#allocation4 + $0x48] sm:$0xff]
        %v311 = vld [vmem:[#allocation4 + $0x50] sm:$0xff]
        %v312 = vld [vmem:[#allocation4 + $0x58] sm:$0xff]
        %v313 = vld [vmem:[#allocation4 + $0x60] sm:$0xff]
        %v314 = vld [vmem:[#allocation4 + $0x68] sm:$0xff]
        %v315 = vld [vmem:[#allocation4 + $0x70] sm:$0xff]
        %v316 = vld [vmem:[#allocation4 + $0x78] sm:$0xff]
        %v317 = vld [vmem:[#allocation4 + $0x80] sm:$0xff]
        %v318 = vld [vmem:[#allocation4 + $0x88] sm:$0xff]
        %v319 = vld [vmem:[#allocation4 + $0x90] sm:$0xff]
        %v320 = vld [vmem:[#allocation4 + $0x98] sm:$0xff]
        %v321 = vld [vmem:[#allocation4 + $0xa0] sm:$0xff]
        %v322 = vld [vmem:[#allocation4 + $0xa8] sm:$0xff]
        %v323 = vld [vmem:[#allocation4 + $0xb0] sm:$0xff]
        %v324 = vld [vmem:[#allocation4 + $0xb8] sm:$0xff]
        %v325 = vld [vmem:[#allocation4 + $0xc0] sm:$0xff]
        %v326 = vld [vmem:[#allocation4 + $0xc8] sm:$0xff]
        %v327 = vld [vmem:[#allocation4 + $0xd0] sm:$0xff]
        %v328 = vld [vmem:[#allocation4 + $0xd8] sm:$0xff]
        %v329 = vld [vmem:[#allocation4 + $0xe0] sm:$0xff]
        %v330 = vld [vmem:[#allocation4 + $0xe8] sm:$0xff]
        %v331 = vld [vmem:[#allocation4 + $0xf0] sm:$0xff]
        %v332 = vld [vmem:[#allocation4 + $0xf8] sm:$0xff]
        %v333 = vld [vmem:[#allocation4 + $0x100] sm:$0xff]
        %v334 = vld [vmem:[#allocation4 + $0x108] sm:$0xff]
        %v335 = vld [vmem:[#allocation4 + $0x110] sm:$0xff]
        %v336 = vld [vmem:[#allocation4 + $0x118] sm:$0xff]
        %v337 = vld [vmem:[#allocation4 + $0x120] sm:$0xff]
        %v338 = vld [vmem:[#allocation4 + $0x128] sm:$0xff]
        %v339 = vld [vmem:[#allocation4 + $0x130] sm:$0xff]
        %v340 = vld [vmem:[#allocation4 + $0x138] sm:$0xff]
        %v341 = vld [vmem:[#allocation4 + $0x140] sm:$0xff]
        %v342 = vld [vmem:[#allocation4 + $0x148] sm:$0xff]
        %v343 = vld [vmem:[#allocation4 + $0x150] sm:$0xff]
        %v344 = vld [vmem:[#allocation4 + $0x158] sm:$0xff]
        %v345 = vld [vmem:[#allocation4 + $0x160] sm:$0xff]
        %v346 = vld [vmem:[#allocation4 + $0x168] sm:$0xff]
        %v347 = vld [vmem:[#allocation4 + $0x170] sm:$0xff]
        %v348 = vld [vmem:[#allocation4 + $0x178] sm:$0xff]
        %v349 = vld [vmem:[#allocation4 + $0x180] sm:$0xff]
        %v350 = vld [vmem:[#allocation4 + $0x188] sm:$0xff]
        %v351 = vld [vmem:[#allocation4 + $0x190] sm:$0xff]
        %v352 = vld [vmem:[#allocation4 + $0x198] sm:$0xff]
        %v353 = vld [vmem:[#allocation4 + $0x1a0] sm:$0xff]
        %v354 = vld [vmem:[#allocation4 + $0x1a8] sm:$0xff]
        %v355 = vld [vmem:[#allocation4 + $0x1b0] sm:$0xff]
        %v356 = vld [vmem:[#allocation4 + $0x1b8] sm:$0xff]
        %v357 = vld [vmem:[#allocation4 + $0x1c0] sm:$0xff]
        %v358 = vld [vmem:[#allocation4 + $0x1c8] sm:$0xff]
        %v359 = vld [vmem:[#allocation4 + $0x1d0] sm:$0xff]
        %v360 = vld [vmem:[#allocation4 + $0x1d8] sm:$0xff]
        %v361 = vld [vmem:[#allocation4 + $0x1e0] sm:$0xff]
        %v362 = vld [vmem:[#allocation4 + $0x1e8] sm:$0xff]
        %v363 = vld [vmem:[#allocation4 + $0x1f0] sm:$0xff]
        %v364 = vld [vmem:[#allocation4 + $0x1f8] sm:$0xff]
        %v365 = vld [vmem:[#allocation4 + $0x200] sm:$0xff]
        %v366 = vld [vmem:[#allocation4 + $0x208] sm:$0xff]
        %v367 = vld [vmem:[#allocation4 + $0x210] sm:$0xff]
        %v368 = vld [vmem:[#allocation4 + $0x218] sm:$0xff]
        %v369 = vld [vmem:[#allocation4 + $0x220] sm:$0xff]
        %v370 = vld [vmem:[#allocation4 + $0x228] sm:$0xff]
        %v371 = vld [vmem:[#allocation4 + $0x230] sm:$0xff]
        %v372 = vld [vmem:[#allocation4 + $0x238] sm:$0xff]
        %v373 = vld [vmem:[#allocation4 + $0x240] sm:$0xff]
        %v374 = vld [vmem:[#allocation4 + $0x248] sm:$0xff]
        %v375 = vld [vmem:[#allocation4 + $0x250] sm:$0xff]
        %v376 = vld [vmem:[#allocation4 + $0x258] sm:$0xff]
        %v377 = vld [vmem:[#allocation4 + $0x260] sm:$0xff]
        %v378 = vld [vmem:[#allocation4 + $0x268] sm:$0xff]
        %v379 = vld [vmem:[#allocation4 + $0x270] sm:$0xff]
        %v380 = vld [vmem:[#allocation4 + $0x278] sm:$0xff]
        %v381 = vld [vmem:[#allocation4 + $0x280] sm:$0xff]
        %v382 = vld [vmem:[#allocation4 + $0x288] sm:$0xff]
        %v383 = vld [vmem:[#allocation4 + $0x290] sm:$0xff]
        %v384 = vld [vmem:[#allocation4 + $0x298] sm:$0xff]
        %v385 = vld [vmem:[#allocation4 + $0x2a0] sm:$0xff]
        %v386 = vld [vmem:[#allocation4 + $0x2a8] sm:$0xff]
        %v387 = vld [vmem:[#allocation4 + $0x2b0] sm:$0xff]
        %v388 = vld [vmem:[#allocation4 + $0x2b8] sm:$0xff]
        %v389 = vld [vmem:[#allocation4 + $0x2c0] sm:$0xff]
        %v390 = vld [vmem:[#allocation4 + $0x2c8] sm:$0xff]
        %v391 = vld [vmem:[#allocation4 + $0x2d0] sm:$0xff]
        %v392 = vld [vmem:[#allocation4 + $0x2d8] sm:$0xff]
        %v393 = vld [vmem:[#allocation4 + $0x2e0] sm:$0xff]
        %v394 = vld [vmem:[#allocation4 + $0x2e8] sm:$0xff]
        %v395 = vld [vmem:[#allocation4 + $0x2f0] sm:$0xff]
        %v396 = vld [vmem:[#allocation4 + $0x2f8] sm:$0xff]
        %v397 = vld [vmem:[#allocation4 + $0x300] sm:$0xff]
        %v398 = vld [vmem:[#allocation4 + $0x308] sm:$0xff]
        %v399 = vld [vmem:[#allocation4 + $0x310] sm:$0xff]
        %v400 = vld [vmem:[#allocation4 + $0x318] sm:$0xff]
        %v401 = vld [vmem:[#allocation4 + $0x320] sm:$0xff]
        %v402 = vld [vmem:[#allocation4 + $0x328] sm:$0xff]
        %v403 = vld [vmem:[#allocation4 + $0x330] sm:$0xff]
        %v404 = vld [vmem:[#allocation4 + $0x338] sm:$0xff]
        %v405 = vld [vmem:[#allocation4 + $0x340] sm:$0xff]
        %v406 = vld [vmem:[#allocation4 + $0x348] sm:$0xff]
        %v407 = vld [vmem:[#allocation4 + $0x350] sm:$0xff]
        %v408 = vld [vmem:[#allocation4 + $0x358] sm:$0xff]
        %v409 = vld [vmem:[#allocation4 + $0x360] sm:$0xff]
        %v410 = vld [vmem:[#allocation4 + $0x368] sm:$0xff]
        %v411 = vld [vmem:[#allocation4 + $0x370] sm:$0xff]
        %v412 = vld [vmem:[#allocation4 + $0x378] sm:$0xff]
        %v413 = vld [vmem:[#allocation4 + $0x380] sm:$0xff]
        %v414 = vld [vmem:[#allocation4 + $0x388] sm:$0xff]
        %v415 = vld [vmem:[#allocation4 + $0x390] sm:$0xff]
        %v416 = vld [vmem:[#allocation4 + $0x398] sm:$0xff]
        %v417 = vld [vmem:[#allocation4 + $0x3a0] sm:$0xff]
        %v418 = vld [vmem:[#allocation4 + $0x3a8] sm:$0xff]
        %v419 = vld [vmem:[#allocation4 + $0x3b0] sm:$0xff]
        %v420 = vld [vmem:[#allocation4 + $0x3b8] sm:$0xff]
        %v421 = vld [vmem:[#allocation4 + $0x3c0] sm:$0xff]
        %v422 = vld [vmem:[#allocation4 + $0x3c8] sm:$0xff]
        %v423 = vld [vmem:[#allocation4 + $0x3d0] sm:$0xff]
        %v424 = vld [vmem:[#allocation4 + $0x3d8] sm:$0xff]
        %v425 = vld [vmem:[#allocation4 + $0x3e0] sm:$0xff]
        %v426 = vld [vmem:[#allocation4 + $0x3e8] sm:$0xff]
        %v427 = vld [vmem:[#allocation4 + $0x3f0] sm:$0xff]
        %v428 = vld [vmem:[#allocation4 + $0x3f8] sm:$0xff]
        %v429 = vld [vmem:[#allocation4 + $0x400] sm:$0xff]
        %v430 = vld [vmem:[#allocation4 + $0x408] sm:$0xff]
        %v431 = vld [vmem:[#allocation4 + $0x410] sm:$0xff]
        %v432 = vld [vmem:[#allocation4 + $0x418] sm:$0xff]
        %v433 = vld [vmem:[#allocation4 + $0x420] sm:$0xff]
        %v434 = vld [vmem:[#allocation4 + $0x428] sm:$0xff]
        %v435 = vld [vmem:[#allocation4 + $0x430] sm:$0xff]
        %v436 = vld [vmem:[#allocation4 + $0x438] sm:$0xff]
        %v437 = vld [vmem:[#allocation4 + $0x440] sm:$0xff]
        %v438 = vld [vmem:[#allocation4 + $0x448] sm:$0xff]
        %v439 = vld [vmem:[#allocation4 + $0x450] sm:$0xff]
        %v440 = vld [vmem:[#allocation4 + $0x458] sm:$0xff]
        %v441 = vld [vmem:[#allocation4 + $0x460] sm:$0xff]
        %v442 = vld [vmem:[#allocation4 + $0x468] sm:$0xff]
        %v443 = vld [vmem:[#allocation4 + $0x470] sm:$0xff]
        %v444 = vld [vmem:[#allocation4 + $0x478] sm:$0xff]
        %v445 = vld [vmem:[#allocation4 + $0x480] sm:$0xff]
        %v446 = vld [vmem:[#allocation4 + $0x488] sm:$0xff]
        %v447 = vld [vmem:[#allocation4 + $0x490] sm:$0xff]
        %v448 = vld [vmem:[#allocation4 + $0x498] sm:$0xff]
        %v449 = vld [vmem:[#allocation4 + $0x4a0] sm:$0xff]
        %v450 = vld [vmem:[#allocation4 + $0x4a8] sm:$0xff]
        %v451 = vld [vmem:[#allocation4 + $0x4b0] sm:$0xff]
        %v452 = vld [vmem:[#allocation4 + $0x4b8] sm:$0xff]
        %v453 = vld [vmem:[#allocation4 + $0x4c0] sm:$0xff]
        %v454 = vld [vmem:[#allocation4 + $0x4c8] sm:$0xff]
        %v455 = vld [vmem:[#allocation4 + $0x4d0] sm:$0xff]
        %v456 = vld [vmem:[#allocation4 + $0x4d8] sm:$0xff]
        %v457 = vld [vmem:[#allocation4 + $0x4e0] sm:$0xff]
        %v458 = vld [vmem:[#allocation4 + $0x4e8] sm:$0xff]
        %v459 = vld [vmem:[#allocation4 + $0x4f0] sm:$0xff]
        %v460 = vld [vmem:[#allocation4 + $0x4f8] sm:$0xff]
        %v461 = vld [vmem:[#allocation4 + $0x500] sm:$0xff]
        %v462 = vld [vmem:[#allocation4 + $0x508] sm:$0xff]
        %v463 = vld [vmem:[#allocation4 + $0x510] sm:$0xff]
        %v464 = vld [vmem:[#allocation4 + $0x518] sm:$0xff]
        %v465 = vld [vmem:[#allocation4 + $0x520] sm:$0xff]
        %v466 = vld [vmem:[#allocation4 + $0x528] sm:$0xff]
        %v467 = vld [vmem:[#allocation4 + $0x530] sm:$0xff]
        %v468 = vld [vmem:[#allocation4 + $0x538] sm:$0xff]
        %v469 = vld [vmem:[#allocation4 + $0x540] sm:$0xff]
        %v470 = vld [vmem:[#allocation4 + $0x548] sm:$0xff]
        %v471 = vld [vmem:[#allocation4 + $0x550] sm:$0xff]
        %v472 = vld [vmem:[#allocation4 + $0x558] sm:$0xff]
        %v473 = vld [vmem:[#allocation4 + $0x560] sm:$0xff]
        %v474 = vld [vmem:[#allocation4 + $0x568] sm:$0xff]
        %v475 = vld [vmem:[#allocation4 + $0x570] sm:$0xff]
        %v476 = vld [vmem:[#allocation4 + $0x578] sm:$0xff]
        %v477 = vld [vmem:[#allocation4 + $0x580] sm:$0xff]
        %v478 = vld [vmem:[#allocation4 + $0x588] sm:$0xff]
        %v479 = vld [vmem:[#allocation4 + $0x590] sm:$0xff]
        %v480 = vld [vmem:[#allocation4 + $0x598] sm:$0xff]
        %v481 = vld [vmem:[#allocation4 + $0x5a0] sm:$0xff]
        %v482 = vld [vmem:[#allocation4 + $0x5a8] sm:$0xff]
        %v483 = vld [vmem:[#allocation4 + $0x5b0] sm:$0xff]
        %v484 = vld [vmem:[#allocation4 + $0x5b8] sm:$0xff]
        %v485 = vld [vmem:[#allocation4 + $0x5c0] sm:$0xff]
        %v486 = vld [vmem:[#allocation4 + $0x5c8] sm:$0xff]
        %v487 = vld [vmem:[#allocation4 + $0x5d0] sm:$0xff]
        %v488 = vld [vmem:[#allocation4 + $0x5d8] sm:$0xff]
        %v489 = vld [vmem:[#allocation4 + $0x5e0] sm:$0xff]
        %v490 = vld [vmem:[#allocation4 + $0x5e8] sm:$0xff]
        %v491 = vld [vmem:[#allocation4 + $0x5f0] sm:$0xff]
        %v492 = vld [vmem:[#allocation4 + $0x5f8] sm:$0xff]
        %v493 = vpack.c.bf16 %v230, %v228
        %v494 = vpack.c.bf16 %v231, %v229
        %v495 = vpack.c.bf16 %v234, %v232
        %v496 = vpack.c.bf16 %v235, %v233
        %v497 = vpack.c.bf16 %v277, %v271
        %v498 = vpack.c.bf16 %v280, %v274
        %v499 = vpack.c.bf16 %v289, %v283
        %v500 = vpack.c.bf16 %v292, %v286
        %v597 = vunpack.c.l.b16 %v397
        %v598 = vunpack.c.h.b16 %v397
        %v599 = vunpack.c.l.b16 %v398
        %v600 = vunpack.c.h.b16 %v398
        %v601 = vunpack.c.l.b16 %v399
        %v602 = vunpack.c.h.b16 %v399
        %v603 = vunpack.c.l.b16 %v400
        %v604 = vunpack.c.h.b16 %v400
        %v605 = vunpack.c.l.b16 %v401
        %v606 = vunpack.c.h.b16 %v401
        %v607 = vunpack.c.l.b16 %v402
        %v608 = vunpack.c.h.b16 %v402
        %v609 = vunpack.c.l.b16 %v403
        %v610 = vunpack.c.h.b16 %v403
        %v611 = vunpack.c.l.b16 %v404
        %v612 = vunpack.c.h.b16 %v404
        %v613 = vunpack.c.l.b16 %v405
        %v614 = vunpack.c.h.b16 %v405
        %v615 = vunpack.c.l.b16 %v406
        %v616 = vunpack.c.h.b16 %v406
        %v617 = vunpack.c.l.b16 %v407
        %v618 = vunpack.c.h.b16 %v407
        %v619 = vunpack.c.l.b16 %v408
        %v620 = vunpack.c.h.b16 %v408
        %v621 = vunpack.c.l.b16 %v409
        %v622 = vunpack.c.h.b16 %v409
        %v623 = vunpack.c.l.b16 %v410
        %v624 = vunpack.c.h.b16 %v410
        %v625 = vunpack.c.l.b16 %v411
        %v626 = vunpack.c.h.b16 %v411
        %v627 = vunpack.c.l.b16 %v412
        %v628 = vunpack.c.h.b16 %v412
        %v629 = vunpack.c.l.b16 %v413
        %v630 = vunpack.c.h.b16 %v413
        %v631 = vunpack.c.l.b16 %v414
        %v632 = vunpack.c.h.b16 %v414
        %v633 = vunpack.c.l.b16 %v415
        %v634 = vunpack.c.h.b16 %v415
        %v635 = vunpack.c.l.b16 %v416
        %v636 = vunpack.c.h.b16 %v416
        %v637 = vunpack.c.l.b16 %v417
        %v638 = vunpack.c.h.b16 %v417
        %v639 = vunpack.c.l.b16 %v418
        %v640 = vunpack.c.h.b16 %v418
        %v641 = vunpack.c.l.b16 %v419
        %v642 = vunpack.c.h.b16 %v419
        %v643 = vunpack.c.l.b16 %v420
        %v644 = vunpack.c.h.b16 %v420
        %v645 = vunpack.c.l.b16 %v421
        %v646 = vunpack.c.h.b16 %v421
        %v647 = vunpack.c.l.b16 %v422
        %v648 = vunpack.c.h.b16 %v422
        %v649 = vunpack.c.l.b16 %v423
        %v650 = vunpack.c.h.b16 %v423
        %v651 = vunpack.c.l.b16 %v424
        %v652 = vunpack.c.h.b16 %v424
        %v653 = vunpack.c.l.b16 %v425
        %v654 = vunpack.c.h.b16 %v425
        %v655 = vunpack.c.l.b16 %v426
        %v656 = vunpack.c.h.b16 %v426
        %v657 = vunpack.c.l.b16 %v427
        %v658 = vunpack.c.h.b16 %v427
        %v659 = vunpack.c.l.b16 %v428
        %v660 = vunpack.c.h.b16 %v428
        %v661 = vunpack.c.l.b16 %v429
        %v662 = vunpack.c.h.b16 %v429
        %v663 = vunpack.c.l.b16 %v430
        %v664 = vunpack.c.h.b16 %v430
        %v665 = vunpack.c.l.b16 %v431
        %v666 = vunpack.c.h.b16 %v431
        %v667 = vunpack.c.l.b16 %v432
        %v668 = vunpack.c.h.b16 %v432
        %v669 = vunpack.c.l.b16 %v433
        %v670 = vunpack.c.h.b16 %v433
        %v671 = vunpack.c.l.b16 %v434
        %v672 = vunpack.c.h.b16 %v434
        %v673 = vunpack.c.l.b16 %v435
        %v674 = vunpack.c.h.b16 %v435
        %v675 = vunpack.c.l.b16 %v436
        %v676 = vunpack.c.h.b16 %v436
        %v677 = vunpack.c.l.b16 %v437
        %v678 = vunpack.c.h.b16 %v437
        %v679 = vunpack.c.l.b16 %v438
        %v680 = vunpack.c.h.b16 %v438
        %v681 = vunpack.c.l.b16 %v439
        %v682 = vunpack.c.h.b16 %v439
        %v683 = vunpack.c.l.b16 %v440
        %v684 = vunpack.c.h.b16 %v440
        %v685 = vunpack.c.l.b16 %v441
        %v686 = vunpack.c.h.b16 %v441
        %v687 = vunpack.c.l.b16 %v442
        %v688 = vunpack.c.h.b16 %v442
        %v689 = vunpack.c.l.b16 %v443
        %v690 = vunpack.c.h.b16 %v443
        %v691 = vunpack.c.l.b16 %v444
        %v692 = vunpack.c.h.b16 %v444
        %v693 = vunpack.c.l.b16 %v445
        %v694 = vunpack.c.h.b16 %v445
        %v695 = vunpack.c.l.b16 %v446
        %v696 = vunpack.c.h.b16 %v446
        %v697 = vunpack.c.l.b16 %v447
        %v698 = vunpack.c.h.b16 %v447
        %v699 = vunpack.c.l.b16 %v448
        %v700 = vunpack.c.h.b16 %v448
        %v701 = vunpack.c.l.b16 %v449
        %v702 = vunpack.c.h.b16 %v449
        %v703 = vunpack.c.l.b16 %v450
        %v704 = vunpack.c.h.b16 %v450
        %v705 = vunpack.c.l.b16 %v451
        %v706 = vunpack.c.h.b16 %v451
        %v707 = vunpack.c.l.b16 %v452
        %v708 = vunpack.c.h.b16 %v452
        %v709 = vunpack.c.l.b16 %v453
        %v710 = vunpack.c.h.b16 %v453
        %v711 = vunpack.c.l.b16 %v454
        %v712 = vunpack.c.h.b16 %v454
        %v713 = vunpack.c.l.b16 %v455
        %v714 = vunpack.c.h.b16 %v455
        %v715 = vunpack.c.l.b16 %v456
        %v716 = vunpack.c.h.b16 %v456
        %v717 = vunpack.c.l.b16 %v457
        %v718 = vunpack.c.h.b16 %v457
        %v719 = vunpack.c.l.b16 %v458
        %v720 = vunpack.c.h.b16 %v458
        %v721 = vunpack.c.l.b16 %v459
        %v722 = vunpack.c.h.b16 %v459
        %v723 = vunpack.c.l.b16 %v460
        %v724 = vunpack.c.h.b16 %v460
        %v725 = vunpack.c.l.b16 %v461
        %v726 = vunpack.c.h.b16 %v461
        %v727 = vunpack.c.l.b16 %v462
        %v728 = vunpack.c.h.b16 %v462
        %v729 = vunpack.c.l.b16 %v463
        %v730 = vunpack.c.h.b16 %v463
        %v731 = vunpack.c.l.b16 %v464
        %v732 = vunpack.c.h.b16 %v464
        %v733 = vunpack.c.l.b16 %v465
        %v734 = vunpack.c.h.b16 %v465
        %v735 = vunpack.c.l.b16 %v466
        %v736 = vunpack.c.h.b16 %v466
        %v737 = vunpack.c.l.b16 %v467
        %v738 = vunpack.c.h.b16 %v467
        %v739 = vunpack.c.l.b16 %v468
        %v740 = vunpack.c.h.b16 %v468
        %v741 = vunpack.c.l.b16 %v469
        %v742 = vunpack.c.h.b16 %v469
        %v743 = vunpack.c.l.b16 %v470
        %v744 = vunpack.c.h.b16 %v470
        %v745 = vunpack.c.l.b16 %v471
        %v746 = vunpack.c.h.b16 %v471
        %v747 = vunpack.c.l.b16 %v472
        %v748 = vunpack.c.h.b16 %v472
        %v749 = vunpack.c.l.b16 %v473
        %v750 = vunpack.c.h.b16 %v473
        %v751 = vunpack.c.l.b16 %v474
        %v752 = vunpack.c.h.b16 %v474
        %v753 = vunpack.c.l.b16 %v475
        %v754 = vunpack.c.h.b16 %v475
        %v755 = vunpack.c.l.b16 %v476
        %v756 = vunpack.c.h.b16 %v476
        %v757 = vunpack.c.l.b16 %v477
        %v758 = vunpack.c.h.b16 %v477
        %v759 = vunpack.c.l.b16 %v478
        %v760 = vunpack.c.h.b16 %v478
        %v761 = vunpack.c.l.b16 %v479
        %v762 = vunpack.c.h.b16 %v479
        %v763 = vunpack.c.l.b16 %v480
        %v764 = vunpack.c.h.b16 %v480
        %v765 = vunpack.c.l.b16 %v481
        %v766 = vunpack.c.h.b16 %v481
        %v767 = vunpack.c.l.b16 %v482
        %v768 = vunpack.c.h.b16 %v482
        %v769 = vunpack.c.l.b16 %v483
        %v770 = vunpack.c.h.b16 %v483
        %v771 = vunpack.c.l.b16 %v484
        %v772 = vunpack.c.h.b16 %v484
        %v773 = vunpack.c.l.b16 %v485
        %v774 = vunpack.c.h.b16 %v485
        %v775 = vunpack.c.l.b16 %v486
        %v776 = vunpack.c.h.b16 %v486
        %v777 = vunpack.c.l.b16 %v487
        %v778 = vunpack.c.h.b16 %v487
        %v779 = vunpack.c.l.b16 %v488
        %v780 = vunpack.c.h.b16 %v488
        %v781 = vunpack.c.l.b16 %v489
        %v782 = vunpack.c.h.b16 %v489
        %v783 = vunpack.c.l.b16 %v490
        %v784 = vunpack.c.h.b16 %v490
        %v785 = vunpack.c.l.b16 %v491
        %v786 = vunpack.c.h.b16 %v491
        %v787 = vunpack.c.l.b16 %v492
        %v788 = vunpack.c.h.b16 %v492
        %v789 = vpack.c.b16 %v603, %v597
        %v790 = vpack.c.b16 %v604, %v598
        %v791 = vpack.c.b16 %v605, %v599
        %v792 = vpack.c.b16 %v606, %v600
        %v793 = vpack.c.b16 %v607, %v601
        %v794 = vpack.c.b16 %v608, %v602
        %v795 = vpack.c.b16 %v615, %v609
        %v796 = vpack.c.b16 %v616, %v610
        %v797 = vpack.c.b16 %v617, %v611
        %v798 = vpack.c.b16 %v618, %v612
        %v799 = vpack.c.b16 %v619, %v613
        %v800 = vpack.c.b16 %v620, %v614
        %v801 = vpack.c.b16 %v627, %v621
        %v802 = vpack.c.b16 %v628, %v622
        %v803 = vpack.c.b16 %v629, %v623
        %v804 = vpack.c.b16 %v630, %v624
        %v805 = vpack.c.b16 %v631, %v625
        %v806 = vpack.c.b16 %v632, %v626
        %v807 = vpack.c.b16 %v639, %v633
        %v808 = vpack.c.b16 %v640, %v634
        %v809 = vpack.c.b16 %v641, %v635
        %v810 = vpack.c.b16 %v642, %v636
        %v811 = vpack.c.b16 %v643, %v637
        %v812 = vpack.c.b16 %v644, %v638
        %v813 = vpack.c.b16 %v651, %v645
        %v814 = vpack.c.b16 %v652, %v646
        %v815 = vpack.c.b16 %v653, %v647
        %v816 = vpack.c.b16 %v654, %v648
        %v817 = vpack.c.b16 %v655, %v649
        %v818 = vpack.c.b16 %v656, %v650
        %v819 = vpack.c.b16 %v663, %v657
        %v820 = vpack.c.b16 %v664, %v658
        %v821 = vpack.c.b16 %v665, %v659
        %v822 = vpack.c.b16 %v666, %v660
        %v823 = vpack.c.b16 %v667, %v661
        %v824 = vpack.c.b16 %v668, %v662
        %v825 = vpack.c.b16 %v675, %v669
        %v826 = vpack.c.b16 %v676, %v670
        %v827 = vpack.c.b16 %v677, %v671
        %v828 = vpack.c.b16 %v678, %v672
        %v829 = vpack.c.b16 %v679, %v673
        %v830 = vpack.c.b16 %v680, %v674
        %v831 = vpack.c.b16 %v687, %v681
        %v832 = vpack.c.b16 %v688, %v682
        %v833 = vpack.c.b16 %v689, %v683
        %v834 = vpack.c.b16 %v690, %v684
        %v835 = vpack.c.b16 %v691, %v685
        %v836 = vpack.c.b16 %v692, %v686
        %v837 = vpack.c.b16 %v699, %v693
        %v838 = vpack.c.b16 %v700, %v694
        %v839 = vpack.c.b16 %v701, %v695
        %v840 = vpack.c.b16 %v702, %v696
        %v841 = vpack.c.b16 %v703, %v697
        %v842 = vpack.c.b16 %v704, %v698
        %v843 = vpack.c.b16 %v711, %v705
        %v844 = vpack.c.b16 %v712, %v706
        %v845 = vpack.c.b16 %v713, %v707
        %v846 = vpack.c.b16 %v714, %v708
        %v847 = vpack.c.b16 %v715, %v709
        %v848 = vpack.c.b16 %v716, %v710
        %v849 = vpack.c.b16 %v723, %v717
        %v850 = vpack.c.b16 %v724, %v718
        %v851 = vpack.c.b16 %v725, %v719
        %v852 = vpack.c.b16 %v726, %v720
        %v853 = vpack.c.b16 %v727, %v721
        %v854 = vpack.c.b16 %v728, %v722
        %v855 = vpack.c.b16 %v735, %v729
        %v856 = vpack.c.b16 %v736, %v730
        %v857 = vpack.c.b16 %v737, %v731
        %v858 = vpack.c.b16 %v738, %v732
        %v859 = vpack.c.b16 %v739, %v733
        %v860 = vpack.c.b16 %v740, %v734
        %v861 = vpack.c.b16 %v747, %v741
        %v862 = vpack.c.b16 %v748, %v742
        %v863 = vpack.c.b16 %v749, %v743
        %v864 = vpack.c.b16 %v750, %v744
        %v865 = vpack.c.b16 %v751, %v745
        %v866 = vpack.c.b16 %v752, %v746
        %v867 = vpack.c.b16 %v759, %v753
        %v868 = vpack.c.b16 %v760, %v754
        %v869 = vpack.c.b16 %v761, %v755
        %v870 = vpack.c.b16 %v762, %v756
        %v871 = vpack.c.b16 %v763, %v757
        %v872 = vpack.c.b16 %v764, %v758
        %v873 = vpack.c.b16 %v771, %v765
        %v874 = vpack.c.b16 %v772, %v766
        %v875 = vpack.c.b16 %v773, %v767
        %v876 = vpack.c.b16 %v774, %v768
        %v877 = vpack.c.b16 %v775, %v769
        %v878 = vpack.c.b16 %v776, %v770
        %v879 = vpack.c.b16 %v783, %v777
        %v880 = vpack.c.b16 %v784, %v778
        %v881 = vpack.c.b16 %v785, %v779
        %v882 = vpack.c.b16 %v786, %v780
        %v883 = vpack.c.b16 %v787, %v781
        %v884 = vpack.c.b16 %v788, %v782
        %981 = vmatprep.subr.bf16.mxu0 %v832
        %982 = vmatpush1.bf16.msra.mxu0 %v831
        %983 = vmatprep.subr.bf16.mxu0 %v826
        %984 = vmatpush1.bf16.msra.mxu0 %v825
        %985 = vmatprep.subr.bf16.mxu0 %v820
        %986 = vmatpush1.bf16.msra.mxu0 %v819
        %987 = vmatprep.subr.bf16.mxu0 %v814
        %988 = vmatpush1.bf16.msra.mxu0 %v813
        %989 = vmatprep.subr.bf16.mxu0 %v808
        %990 = vmatpush1.bf16.msra.mxu0 %v807
        %991 = vmatprep.subr.bf16.mxu0 %v802
        %992 = vmatpush1.bf16.msra.mxu0 %v801
        %993 = vmatprep.subr.bf16.mxu0 %v796
        %994 = vmatpush1.bf16.msra.mxu0 %v795
        %995 = vmatprep.subr.bf16.mxu0 %v790
        %996 = vmatpush1.bf16.msra.mxu0 %v789
        %997 = vmatprep.subr.bf16.mxu0 %v880
        %998 = vmatpush2.bf16.msra.mxu0 %v879
        %999 = vmatprep.subr.bf16.mxu0 %v874
        %1000 = vmatpush2.bf16.msra.mxu0 %v873
        %1001 = vmatprep.subr.bf16.mxu0 %v868
        %1002 = vmatpush2.bf16.msra.mxu0 %v867
        %1003 = vmatprep.subr.bf16.mxu0 %v862
        %1004 = vmatpush2.bf16.msra.mxu0 %v861
        %1005 = vmatprep.subr.bf16.mxu0 %v856
        %1006 = vmatpush2.bf16.msra.mxu0 %v855
        %1007 = vmatprep.subr.bf16.mxu0 %v850
        %1008 = vmatpush2.bf16.msra.mxu0 %v849
        %1009 = vmatprep.subr.bf16.mxu0 %v844
        %1010 = vmatpush2.bf16.msra.mxu0 %v843
        %1011 = vmatprep.subr.bf16.mxu0 %v838
        %1012 = vmatpush2.bf16.msra.mxu0 %v837
        %1013 = vmatprep.mubr.bf16.mxu0 %v498
        %1014 = vmatmul.mubr.bf16.gmra.mxu0 %v497
        %v1015 = vpop.f32.mrf.mxu0
        %v1016 = vadd.f32 0.0, %v1015
        %v1017 = vpop.f32.mrf.mxu0
        %v1018 = vadd.f32 0.0, %v1017
        %v1019 = vpop.f32.mrf.mxu0
        %v1020 = vadd.f32 0.0, %v1019
        %v1021 = vpop.f32.mrf.mxu0
        %v1022 = vadd.f32 0.0, %v1021
        %1023 = vmatprep.mubr.bf16.mxu0 %v500
        %1024 = vmatmul.mubr.bf16.gmra.mxu0 %v499
        %v1025 = vpop.f32.mrf.mxu0
        %v1026 = vadd.f32 0.0, %v1025
        %v1027 = vpop.f32.mrf.mxu0
        %v1028 = vadd.f32 0.0, %v1027
        %v1029 = vpop.f32.mrf.mxu0
        %v1030 = vadd.f32 0.0, %v1029
        %v1031 = vpop.f32.mrf.mxu0
        %v1032 = vadd.f32 0.0, %v1031
        %1033 = vdwg.mxu0
        %1034 = vmatprep.subr.bf16.mxu0 %v834
        %1035 = vmatpush1.bf16.msra.mxu0 %v833
        %1036 = vmatprep.subr.bf16.mxu0 %v828
        %1037 = vmatpush1.bf16.msra.mxu0 %v827
        %1038 = vmatprep.subr.bf16.mxu0 %v822
        %1039 = vmatpush1.bf16.msra.mxu0 %v821
        %1040 = vmatprep.subr.bf16.mxu0 %v816
        %1041 = vmatpush1.bf16.msra.mxu0 %v815
        %1042 = vmatprep.subr.bf16.mxu0 %v810
        %1043 = vmatpush1.bf16.msra.mxu0 %v809
        %1044 = vmatprep.subr.bf16.mxu0 %v804
        %1045 = vmatpush1.bf16.msra.mxu0 %v803
        %1046 = vmatprep.subr.bf16.mxu0 %v798
        %1047 = vmatpush1.bf16.msra.mxu0 %v797
        %1048 = vmatprep.subr.bf16.mxu0 %v792
        %1049 = vmatpush1.bf16.msra.mxu0 %v791
        %1050 = vmatprep.subr.bf16.mxu0 %v882
        %1051 = vmatpush2.bf16.msra.mxu0 %v881
        %1052 = vmatprep.subr.bf16.mxu0 %v876
        %1053 = vmatpush2.bf16.msra.mxu0 %v875
        %1054 = vmatprep.subr.bf16.mxu0 %v870
        %1055 = vmatpush2.bf16.msra.mxu0 %v869
        %1056 = vmatprep.subr.bf16.mxu0 %v864
        %1057 = vmatpush2.bf16.msra.mxu0 %v863
        %1058 = vmatprep.subr.bf16.mxu0 %v858
        %1059 = vmatpush2.bf16.msra.mxu0 %v857
        %1060 = vmatprep.subr.bf16.mxu0 %v852
        %1061 = vmatpush2.bf16.msra.mxu0 %v851
        %1062 = vmatprep.subr.bf16.mxu0 %v846
        %1063 = vmatpush2.bf16.msra.mxu0 %v845
        %1064 = vmatprep.subr.bf16.mxu0 %v840
        %1065 = vmatpush2.bf16.msra.mxu0 %v839
        %1066 = vmatprep.mubr.bf16.mxu0 %v498
        %1067 = vmatmul.mubr.bf16.gmra.mxu0 %v497
        %v1068 = vpop.f32.mrf.mxu0
        %v1069 = vadd.f32 0.0, %v1068
        %v1070 = vpop.f32.mrf.mxu0
        %v1071 = vadd.f32 0.0, %v1070
        %v1072 = vpop.f32.mrf.mxu0
        %v1073 = vadd.f32 0.0, %v1072
        %v1074 = vpop.f32.mrf.mxu0
        %v1075 = vadd.f32 0.0, %v1074
        %1076 = vmatprep.mubr.bf16.mxu0 %v500
        %1077 = vmatmul.mubr.bf16.gmra.mxu0 %v499
        %v1078 = vpop.f32.mrf.mxu0
        %v1079 = vadd.f32 0.0, %v1078
        %v1080 = vpop.f32.mrf.mxu0
        %v1081 = vadd.f32 0.0, %v1080
        %v1082 = vpop.f32.mrf.mxu0
        %v1083 = vadd.f32 0.0, %v1082
        %v1084 = vpop.f32.mrf.mxu0
        %v1085 = vadd.f32 0.0, %v1084
        %1086 = vdwg.mxu0
        %1087 = vmatprep.subr.bf16.mxu0 %v836
        %1088 = vmatpush1.bf16.msra.mxu0 %v835
        %1089 = vmatprep.subr.bf16.mxu0 %v830
        %1090 = vmatpush1.bf16.msra.mxu0 %v829
        %1091 = vmatprep.subr.bf16.mxu0 %v824
        %1092 = vmatpush1.bf16.msra.mxu0 %v823
        %1093 = vmatprep.subr.bf16.mxu0 %v818
        %1094 = vmatpush1.bf16.msra.mxu0 %v817
        %1095 = vmatprep.subr.bf16.mxu0 %v812
        %1096 = vmatpush1.bf16.msra.mxu0 %v811
        %1097 = vmatprep.subr.bf16.mxu0 %v806
        %1098 = vmatpush1.bf16.msra.mxu0 %v805
        %1099 = vmatprep.subr.bf16.mxu0 %v800
        %1100 = vmatpush1.bf16.msra.mxu0 %v799
        %1101 = vmatprep.subr.bf16.mxu0 %v794
        %1102 = vmatpush1.bf16.msra.mxu0 %v793
        %1103 = vmatprep.subr.bf16.mxu0 %v884
        %1104 = vmatpush2.bf16.msra.mxu0 %v883
        %1105 = vmatprep.subr.bf16.mxu0 %v878
        %1106 = vmatpush2.bf16.msra.mxu0 %v877
        %1107 = vmatprep.subr.bf16.mxu0 %v872
        %1108 = vmatpush2.bf16.msra.mxu0 %v871
        %1109 = vmatprep.subr.bf16.mxu0 %v866
        %1110 = vmatpush2.bf16.msra.mxu0 %v865
        %1111 = vmatprep.subr.bf16.mxu0 %v860
        %1112 = vmatpush2.bf16.msra.mxu0 %v859
        %1113 = vmatprep.subr.bf16.mxu0 %v854
        %1114 = vmatpush2.bf16.msra.mxu0 %v853
        %1115 = vmatprep.subr.bf16.mxu0 %v848
        %1116 = vmatpush2.bf16.msra.mxu0 %v847
        %1117 = vmatprep.subr.bf16.mxu0 %v842
        %1118 = vmatpush2.bf16.msra.mxu0 %v841
        %1119 = vmatprep.mubr.bf16.mxu0 %v498
        %1120 = vmatmul.mubr.bf16.gmra.mxu0 %v497
        %v1121 = vpop.f32.mrf.mxu0
        %v1122 = vadd.f32 0.0, %v1121
        %v1123 = vpop.f32.mrf.mxu0
        %v1124 = vadd.f32 0.0, %v1123
        %v1125 = vpop.f32.mrf.mxu0
        %v1126 = vadd.f32 0.0, %v1125
        %v1127 = vpop.f32.mrf.mxu0
        %v1128 = vadd.f32 0.0, %v1127
        %1129 = vmatprep.mubr.bf16.mxu0 %v500
        %1130 = vmatmul.mubr.bf16.gmra.mxu0 %v499
        %v1131 = vpop.f32.mrf.mxu0
        %v1132 = vadd.f32 0.0, %v1131
        %v1133 = vpop.f32.mrf.mxu0
        %v1134 = vadd.f32 0.0, %v1133
        %v1135 = vpop.f32.mrf.mxu0
        %v1136 = vadd.f32 0.0, %v1135
        %v1137 = vpop.f32.mrf.mxu0
        %v1138 = vadd.f32 0.0, %v1137
        %1139 = vdwg.mxu0
        %v1236 = vunpack.c.l.b16 %v301
        %v1237 = vunpack.c.h.b16 %v301
        %v1238 = vunpack.c.l.b16 %v302
        %v1239 = vunpack.c.h.b16 %v302
        %v1240 = vunpack.c.l.b16 %v303
        %v1241 = vunpack.c.h.b16 %v303
        %v1242 = vunpack.c.l.b16 %v304
        %v1243 = vunpack.c.h.b16 %v304
        %v1244 = vunpack.c.l.b16 %v305
        %v1245 = vunpack.c.h.b16 %v305
        %v1246 = vunpack.c.l.b16 %v306
        %v1247 = vunpack.c.h.b16 %v306
        %v1248 = vunpack.c.l.b16 %v307
        %v1249 = vunpack.c.h.b16 %v307
        %v1250 = vunpack.c.l.b16 %v308
        %v1251 = vunpack.c.h.b16 %v308
        %v1252 = vunpack.c.l.b16 %v309
        %v1253 = vunpack.c.h.b16 %v309
        %v1254 = vunpack.c.l.b16 %v310
        %v1255 = vunpack.c.h.b16 %v310
        %v1256 = vunpack.c.l.b16 %v311
        %v1257 = vunpack.c.h.b16 %v311
        %v1258 = vunpack.c.l.b16 %v312
        %v1259 = vunpack.c.h.b16 %v312
        %v1260 = vunpack.c.l.b16 %v313
        %v1261 = vunpack.c.h.b16 %v313
        %v1262 = vunpack.c.l.b16 %v314
        %v1263 = vunpack.c.h.b16 %v314
        %v1264 = vunpack.c.l.b16 %v315
        %v1265 = vunpack.c.h.b16 %v315
        %v1266 = vunpack.c.l.b16 %v316
        %v1267 = vunpack.c.h.b16 %v316
        %v1268 = vunpack.c.l.b16 %v317
        %v1269 = vunpack.c.h.b16 %v317
        %v1270 = vunpack.c.l.b16 %v318
        %v1271 = vunpack.c.h.b16 %v318
        %v1272 = vunpack.c.l.b16 %v319
        %v1273 = vunpack.c.h.b16 %v319
        %v1274 = vunpack.c.l.b16 %v320
        %v1275 = vunpack.c.h.b16 %v320
        %v1276 = vunpack.c.l.b16 %v321
        %v1277 = vunpack.c.h.b16 %v321
        %v1278 = vunpack.c.l.b16 %v322
        %v1279 = vunpack.c.h.b16 %v322
        %v1280 = vunpack.c.l.b16 %v323
        %v1281 = vunpack.c.h.b16 %v323
        %v1282 = vunpack.c.l.b16 %v324
        %v1283 = vunpack.c.h.b16 %v324
        %v1284 = vunpack.c.l.b16 %v325
        %v1285 = vunpack.c.h.b16 %v325
        %v1286 = vunpack.c.l.b16 %v326
        %v1287 = vunpack.c.h.b16 %v326
        %v1288 = vunpack.c.l.b16 %v327
        %v1289 = vunpack.c.h.b16 %v327
        %v1290 = vunpack.c.l.b16 %v328
        %v1291 = vunpack.c.h.b16 %v328
        %v1292 = vunpack.c.l.b16 %v329
        %v1293 = vunpack.c.h.b16 %v329
        %v1294 = vunpack.c.l.b16 %v330
        %v1295 = vunpack.c.h.b16 %v330
        %v1296 = vunpack.c.l.b16 %v331
        %v1297 = vunpack.c.h.b16 %v331
        %v1298 = vunpack.c.l.b16 %v332
        %v1299 = vunpack.c.h.b16 %v332
        %v1300 = vunpack.c.l.b16 %v333
        %v1301 = vunpack.c.h.b16 %v333
        %v1302 = vunpack.c.l.b16 %v334
        %v1303 = vunpack.c.h.b16 %v334
        %v1304 = vunpack.c.l.b16 %v335
        %v1305 = vunpack.c.h.b16 %v335
        %v1306 = vunpack.c.l.b16 %v336
        %v1307 = vunpack.c.h.b16 %v336
        %v1308 = vunpack.c.l.b16 %v337
        %v1309 = vunpack.c.h.b16 %v337
        %v1310 = vunpack.c.l.b16 %v338
        %v1311 = vunpack.c.h.b16 %v338
        %v1312 = vunpack.c.l.b16 %v339
        %v1313 = vunpack.c.h.b16 %v339
        %v1314 = vunpack.c.l.b16 %v340
        %v1315 = vunpack.c.h.b16 %v340
        %v1316 = vunpack.c.l.b16 %v341
        %v1317 = vunpack.c.h.b16 %v341
        %v1318 = vunpack.c.l.b16 %v342
        %v1319 = vunpack.c.h.b16 %v342
        %v1320 = vunpack.c.l.b16 %v343
        %v1321 = vunpack.c.h.b16 %v343
        %v1322 = vunpack.c.l.b16 %v344
        %v1323 = vunpack.c.h.b16 %v344
        %v1324 = vunpack.c.l.b16 %v345
        %v1325 = vunpack.c.h.b16 %v345
        %v1326 = vunpack.c.l.b16 %v346
        %v1327 = vunpack.c.h.b16 %v346
        %v1328 = vunpack.c.l.b16 %v347
        %v1329 = vunpack.c.h.b16 %v347
        %v1330 = vunpack.c.l.b16 %v348
        %v1331 = vunpack.c.h.b16 %v348
        %v1332 = vunpack.c.l.b16 %v349
        %v1333 = vunpack.c.h.b16 %v349
        %v1334 = vunpack.c.l.b16 %v350
        %v1335 = vunpack.c.h.b16 %v350
        %v1336 = vunpack.c.l.b16 %v351
        %v1337 = vunpack.c.h.b16 %v351
        %v1338 = vunpack.c.l.b16 %v352
        %v1339 = vunpack.c.h.b16 %v352
        %v1340 = vunpack.c.l.b16 %v353
        %v1341 = vunpack.c.h.b16 %v353
        %v1342 = vunpack.c.l.b16 %v354
        %v1343 = vunpack.c.h.b16 %v354
        %v1344 = vunpack.c.l.b16 %v355
        %v1345 = vunpack.c.h.b16 %v355
        %v1346 = vunpack.c.l.b16 %v356
        %v1347 = vunpack.c.h.b16 %v356
        %v1348 = vunpack.c.l.b16 %v357
        %v1349 = vunpack.c.h.b16 %v357
        %v1350 = vunpack.c.l.b16 %v358
        %v1351 = vunpack.c.h.b16 %v358
        %v1352 = vunpack.c.l.b16 %v359
        %v1353 = vunpack.c.h.b16 %v359
        %v1354 = vunpack.c.l.b16 %v360
        %v1355 = vunpack.c.h.b16 %v360
        %v1356 = vunpack.c.l.b16 %v361
        %v1357 = vunpack.c.h.b16 %v361
        %v1358 = vunpack.c.l.b16 %v362
        %v1359 = vunpack.c.h.b16 %v362
        %v1360 = vunpack.c.l.b16 %v363
        %v1361 = vunpack.c.h.b16 %v363
        %v1362 = vunpack.c.l.b16 %v364
        %v1363 = vunpack.c.h.b16 %v364
        %v1364 = vunpack.c.l.b16 %v365
        %v1365 = vunpack.c.h.b16 %v365
        %v1366 = vunpack.c.l.b16 %v366
        %v1367 = vunpack.c.h.b16 %v366
        %v1368 = vunpack.c.l.b16 %v367
        %v1369 = vunpack.c.h.b16 %v367
        %v1370 = vunpack.c.l.b16 %v368
        %v1371 = vunpack.c.h.b16 %v368
        %v1372 = vunpack.c.l.b16 %v369
        %v1373 = vunpack.c.h.b16 %v369
        %v1374 = vunpack.c.l.b16 %v370
        %v1375 = vunpack.c.h.b16 %v370
        %v1376 = vunpack.c.l.b16 %v371
        %v1377 = vunpack.c.h.b16 %v371
        %v1378 = vunpack.c.l.b16 %v372
        %v1379 = vunpack.c.h.b16 %v372
        %v1380 = vunpack.c.l.b16 %v373
        %v1381 = vunpack.c.h.b16 %v373
        %v1382 = vunpack.c.l.b16 %v374
        %v1383 = vunpack.c.h.b16 %v374
        %v1384 = vunpack.c.l.b16 %v375
        %v1385 = vunpack.c.h.b16 %v375
        %v1386 = vunpack.c.l.b16 %v376
        %v1387 = vunpack.c.h.b16 %v376
        %v1388 = vunpack.c.l.b16 %v377
        %v1389 = vunpack.c.h.b16 %v377
        %v1390 = vunpack.c.l.b16 %v378
        %v1391 = vunpack.c.h.b16 %v378
        %v1392 = vunpack.c.l.b16 %v379
        %v1393 = vunpack.c.h.b16 %v379
        %v1394 = vunpack.c.l.b16 %v380
        %v1395 = vunpack.c.h.b16 %v380
        %v1396 = vunpack.c.l.b16 %v381
        %v1397 = vunpack.c.h.b16 %v381
        %v1398 = vunpack.c.l.b16 %v382
        %v1399 = vunpack.c.h.b16 %v382
        %v1400 = vunpack.c.l.b16 %v383
        %v1401 = vunpack.c.h.b16 %v383
        %v1402 = vunpack.c.l.b16 %v384
        %v1403 = vunpack.c.h.b16 %v384
        %v1404 = vunpack.c.l.b16 %v385
        %v1405 = vunpack.c.h.b16 %v385
        %v1406 = vunpack.c.l.b16 %v386
        %v1407 = vunpack.c.h.b16 %v386
        %v1408 = vunpack.c.l.b16 %v387
        %v1409 = vunpack.c.h.b16 %v387
        %v1410 = vunpack.c.l.b16 %v388
        %v1411 = vunpack.c.h.b16 %v388
        %v1412 = vunpack.c.l.b16 %v389
        %v1413 = vunpack.c.h.b16 %v389
        %v1414 = vunpack.c.l.b16 %v390
        %v1415 = vunpack.c.h.b16 %v390
        %v1416 = vunpack.c.l.b16 %v391
        %v1417 = vunpack.c.h.b16 %v391
        %v1418 = vunpack.c.l.b16 %v392
        %v1419 = vunpack.c.h.b16 %v392
        %v1420 = vunpack.c.l.b16 %v393
        %v1421 = vunpack.c.h.b16 %v393
        %v1422 = vunpack.c.l.b16 %v394
        %v1423 = vunpack.c.h.b16 %v394
        %v1424 = vunpack.c.l.b16 %v395
        %v1425 = vunpack.c.h.b16 %v395
        %v1426 = vunpack.c.l.b16 %v396
        %v1427 = vunpack.c.h.b16 %v396
        %v1428 = vpack.c.b16 %v1242, %v1236
        %v1429 = vpack.c.b16 %v1243, %v1237
        %v1430 = vpack.c.b16 %v1244, %v1238
        %v1431 = vpack.c.b16 %v1245, %v1239
        %v1432 = vpack.c.b16 %v1246, %v1240
        %v1433 = vpack.c.b16 %v1247, %v1241
        %v1434 = vpack.c.b16 %v1254, %v1248
        %v1435 = vpack.c.b16 %v1255, %v1249
        %v1436 = vpack.c.b16 %v1256, %v1250
        %v1437 = vpack.c.b16 %v1257, %v1251
        %v1438 = vpack.c.b16 %v1258, %v1252
        %v1439 = vpack.c.b16 %v1259, %v1253
        %v1440 = vpack.c.b16 %v1266, %v1260
        %v1441 = vpack.c.b16 %v1267, %v1261
        %v1442 = vpack.c.b16 %v1268, %v1262
        %v1443 = vpack.c.b16 %v1269, %v1263
        %v1444 = vpack.c.b16 %v1270, %v1264
        %v1445 = vpack.c.b16 %v1271, %v1265
        %v1446 = vpack.c.b16 %v1278, %v1272
        %v1447 = vpack.c.b16 %v1279, %v1273
        %v1448 = vpack.c.b16 %v1280, %v1274
        %v1449 = vpack.c.b16 %v1281, %v1275
        %v1450 = vpack.c.b16 %v1282, %v1276
        %v1451 = vpack.c.b16 %v1283, %v1277
        %v1452 = vpack.c.b16 %v1290, %v1284
        %v1453 = vpack.c.b16 %v1291, %v1285
        %v1454 = vpack.c.b16 %v1292, %v1286
        %v1455 = vpack.c.b16 %v1293, %v1287
        %v1456 = vpack.c.b16 %v1294, %v1288
        %v1457 = vpack.c.b16 %v1295, %v1289
        %v1458 = vpack.c.b16 %v1302, %v1296
        %v1459 = vpack.c.b16 %v1303, %v1297
        %v1460 = vpack.c.b16 %v1304, %v1298
        %v1461 = vpack.c.b16 %v1305, %v1299
        %v1462 = vpack.c.b16 %v1306, %v1300
        %v1463 = vpack.c.b16 %v1307, %v1301
        %v1464 = vpack.c.b16 %v1314, %v1308
        %v1465 = vpack.c.b16 %v1315, %v1309
        %v1466 = vpack.c.b16 %v1316, %v1310
        %v1467 = vpack.c.b16 %v1317, %v1311
        %v1468 = vpack.c.b16 %v1318, %v1312
        %v1469 = vpack.c.b16 %v1319, %v1313
        %v1470 = vpack.c.b16 %v1326, %v1320
        %v1471 = vpack.c.b16 %v1327, %v1321
        %v1472 = vpack.c.b16 %v1328, %v1322
        %v1473 = vpack.c.b16 %v1329, %v1323
        %v1474 = vpack.c.b16 %v1330, %v1324
        %v1475 = vpack.c.b16 %v1331, %v1325
        %v1476 = vpack.c.b16 %v1338, %v1332
        %v1477 = vpack.c.b16 %v1339, %v1333
        %v1478 = vpack.c.b16 %v1340, %v1334
        %v1479 = vpack.c.b16 %v1341, %v1335
        %v1480 = vpack.c.b16 %v1342, %v1336
        %v1481 = vpack.c.b16 %v1343, %v1337
        %v1482 = vpack.c.b16 %v1350, %v1344
        %v1483 = vpack.c.b16 %v1351, %v1345
        %v1484 = vpack.c.b16 %v1352, %v1346
        %v1485 = vpack.c.b16 %v1353, %v1347
        %v1486 = vpack.c.b16 %v1354, %v1348
        %v1487 = vpack.c.b16 %v1355, %v1349
        %v1488 = vpack.c.b16 %v1362, %v1356
        %v1489 = vpack.c.b16 %v1363, %v1357
        %v1490 = vpack.c.b16 %v1364, %v1358
        %v1491 = vpack.c.b16 %v1365, %v1359
        %v1492 = vpack.c.b16 %v1366, %v1360
        %v1493 = vpack.c.b16 %v1367, %v1361
        %v1494 = vpack.c.b16 %v1374, %v1368
        %v1495 = vpack.c.b16 %v1375, %v1369
        %v1496 = vpack.c.b16 %v1376, %v1370
        %v1497 = vpack.c.b16 %v1377, %v1371
        %v1498 = vpack.c.b16 %v1378, %v1372
        %v1499 = vpack.c.b16 %v1379, %v1373
        %v1500 = vpack.c.b16 %v1386, %v1380
        %v1501 = vpack.c.b16 %v1387, %v1381
        %v1502 = vpack.c.b16 %v1388, %v1382
        %v1503 = vpack.c.b16 %v1389, %v1383
        %v1504 = vpack.c.b16 %v1390, %v1384
        %v1505 = vpack.c.b16 %v1391, %v1385
        %v1506 = vpack.c.b16 %v1398, %v1392
        %v1507 = vpack.c.b16 %v1399, %v1393
        %v1508 = vpack.c.b16 %v1400, %v1394
        %v1509 = vpack.c.b16 %v1401, %v1395
        %v1510 = vpack.c.b16 %v1402, %v1396
        %v1511 = vpack.c.b16 %v1403, %v1397
        %v1512 = vpack.c.b16 %v1410, %v1404
        %v1513 = vpack.c.b16 %v1411, %v1405
        %v1514 = vpack.c.b16 %v1412, %v1406
        %v1515 = vpack.c.b16 %v1413, %v1407
        %v1516 = vpack.c.b16 %v1414, %v1408
        %v1517 = vpack.c.b16 %v1415, %v1409
        %v1518 = vpack.c.b16 %v1422, %v1416
        %v1519 = vpack.c.b16 %v1423, %v1417
        %v1520 = vpack.c.b16 %v1424, %v1418
        %v1521 = vpack.c.b16 %v1425, %v1419
        %v1522 = vpack.c.b16 %v1426, %v1420
        %v1523 = vpack.c.b16 %v1427, %v1421
        %1620 = vmatprep.subr.bf16.mxu0 %v1471
        %1621 = vmatpush1.bf16.msra.mxu0 %v1470
        %1622 = vmatprep.subr.bf16.mxu0 %v1465
        %1623 = vmatpush1.bf16.msra.mxu0 %v1464
        %1624 = vmatprep.subr.bf16.mxu0 %v1459
        %1625 = vmatpush1.bf16.msra.mxu0 %v1458
        %1626 = vmatprep.subr.bf16.mxu0 %v1453
        %1627 = vmatpush1.bf16.msra.mxu0 %v1452
        %1628 = vmatprep.subr.bf16.mxu0 %v1447
        %1629 = vmatpush1.bf16.msra.mxu0 %v1446
        %1630 = vmatprep.subr.bf16.mxu0 %v1441
        %1631 = vmatpush1.bf16.msra.mxu0 %v1440
        %1632 = vmatprep.subr.bf16.mxu0 %v1435
        %1633 = vmatpush1.bf16.msra.mxu0 %v1434
        %1634 = vmatprep.subr.bf16.mxu0 %v1429
        %1635 = vmatpush1.bf16.msra.mxu0 %v1428
        %1636 = vmatprep.subr.bf16.mxu0 %v1519
        %1637 = vmatpush2.bf16.msra.mxu0 %v1518
        %1638 = vmatprep.subr.bf16.mxu0 %v1513
        %1639 = vmatpush2.bf16.msra.mxu0 %v1512
        %1640 = vmatprep.subr.bf16.mxu0 %v1507
        %1641 = vmatpush2.bf16.msra.mxu0 %v1506
        %1642 = vmatprep.subr.bf16.mxu0 %v1501
        %1643 = vmatpush2.bf16.msra.mxu0 %v1500
        %1644 = vmatprep.subr.bf16.mxu0 %v1495
        %1645 = vmatpush2.bf16.msra.mxu0 %v1494
        %1646 = vmatprep.subr.bf16.mxu0 %v1489
        %1647 = vmatpush2.bf16.msra.mxu0 %v1488
        %1648 = vmatprep.subr.bf16.mxu0 %v1483
        %1649 = vmatpush2.bf16.msra.mxu0 %v1482
        %1650 = vmatprep.subr.bf16.mxu0 %v1477
        %1651 = vmatpush2.bf16.msra.mxu0 %v1476
        %1652 = vmatprep.mubr.bf16.mxu0 %v494
        %1653 = vmatmul.mubr.bf16.gmra.mxu0 %v493
        %v1654 = vpop.f32.mrf.mxu0
        %v1655 = vadd.f32 %v1016, %v1654
        %v1656 = vpop.f32.mrf.mxu0
        %v1657 = vadd.f32 %v1018, %v1656
        %v1658 = vpop.f32.mrf.mxu0
        %v1659 = vadd.f32 %v1020, %v1658
        %v1660 = vpop.f32.mrf.mxu0
        %v1661 = vadd.f32 %v1022, %v1660
        %1662 = vmatprep.mubr.bf16.mxu0 %v496
        %1663 = vmatmul.mubr.bf16.gmra.mxu0 %v495
        %v1664 = vpop.f32.mrf.mxu0
        %v1665 = vadd.f32 %v1026, %v1664
        %v1666 = vpop.f32.mrf.mxu0
        %v1667 = vadd.f32 %v1028, %v1666
        %v1668 = vpop.f32.mrf.mxu0
        %v1669 = vadd.f32 %v1030, %v1668
        %v1670 = vpop.f32.mrf.mxu0
        %v1671 = vadd.f32 %v1032, %v1670
        %1672 = vdwg.mxu0
        %1673 = vmatprep.subr.bf16.mxu0 %v1473
        %1674 = vmatpush1.bf16.msra.mxu0 %v1472
        %1675 = vmatprep.subr.bf16.mxu0 %v1467
        %1676 = vmatpush1.bf16.msra.mxu0 %v1466
        %1677 = vmatprep.subr.bf16.mxu0 %v1461
        %1678 = vmatpush1.bf16.msra.mxu0 %v1460
        %1679 = vmatprep.subr.bf16.mxu0 %v1455
        %1680 = vmatpush1.bf16.msra.mxu0 %v1454
        %1681 = vmatprep.subr.bf16.mxu0 %v1449
        %1682 = vmatpush1.bf16.msra.mxu0 %v1448
        %1683 = vmatprep.subr.bf16.mxu0 %v1443
        %1684 = vmatpush1.bf16.msra.mxu0 %v1442
        %1685 = vmatprep.subr.bf16.mxu0 %v1437
        %1686 = vmatpush1.bf16.msra.mxu0 %v1436
        %1687 = vmatprep.subr.bf16.mxu0 %v1431
        %1688 = vmatpush1.bf16.msra.mxu0 %v1430
        %1689 = vmatprep.subr.bf16.mxu0 %v1521
        %1690 = vmatpush2.bf16.msra.mxu0 %v1520
        %1691 = vmatprep.subr.bf16.mxu0 %v1515
        %1692 = vmatpush2.bf16.msra.mxu0 %v1514
        %1693 = vmatprep.subr.bf16.mxu0 %v1509
        %1694 = vmatpush2.bf16.msra.mxu0 %v1508
        %1695 = vmatprep.subr.bf16.mxu0 %v1503
        %1696 = vmatpush2.bf16.msra.mxu0 %v1502
        %1697 = vmatprep.subr.bf16.mxu0 %v1497
        %1698 = vmatpush2.bf16.msra.mxu0 %v1496
        %1699 = vmatprep.subr.bf16.mxu0 %v1491
        %1700 = vmatpush2.bf16.msra.mxu0 %v1490
        %1701 = vmatprep.subr.bf16.mxu0 %v1485
        %1702 = vmatpush2.bf16.msra.mxu0 %v1484
        %1703 = vmatprep.subr.bf16.mxu0 %v1479
        %1704 = vmatpush2.bf16.msra.mxu0 %v1478
        %1705 = vmatprep.mubr.bf16.mxu0 %v494
        %1706 = vmatmul.mubr.bf16.gmra.mxu0 %v493
        %v1707 = vpop.f32.mrf.mxu0
        %v1708 = vadd.f32 %v1069, %v1707
        %v1709 = vpop.f32.mrf.mxu0
        %v1710 = vadd.f32 %v1071, %v1709
        %v1711 = vpop.f32.mrf.mxu0
        %v1712 = vadd.f32 %v1073, %v1711
        %v1713 = vpop.f32.mrf.mxu0
        %v1714 = vadd.f32 %v1075, %v1713
        %1715 = vmatprep.mubr.bf16.mxu0 %v496
        %1716 = vmatmul.mubr.bf16.gmra.mxu0 %v495
        %v1717 = vpop.f32.mrf.mxu0
        %v1718 = vadd.f32 %v1079, %v1717
        %v1719 = vpop.f32.mrf.mxu0
        %v1720 = vadd.f32 %v1081, %v1719
        %v1721 = vpop.f32.mrf.mxu0
        %v1722 = vadd.f32 %v1083, %v1721
        %v1723 = vpop.f32.mrf.mxu0
        %v1724 = vadd.f32 %v1085, %v1723
        %1725 = vdwg.mxu0
        %1726 = vmatprep.subr.bf16.mxu0 %v1475
        %1727 = vmatpush1.bf16.msra.mxu0 %v1474
        %1728 = vmatprep.subr.bf16.mxu0 %v1469
        %1729 = vmatpush1.bf16.msra.mxu0 %v1468
        %1730 = vmatprep.subr.bf16.mxu0 %v1463
        %1731 = vmatpush1.bf16.msra.mxu0 %v1462
        %1732 = vmatprep.subr.bf16.mxu0 %v1457
        %1733 = vmatpush1.bf16.msra.mxu0 %v1456
        %1734 = vmatprep.subr.bf16.mxu0 %v1451
        %1735 = vmatpush1.bf16.msra.mxu0 %v1450
        %1736 = vmatprep.subr.bf16.mxu0 %v1445
        %1737 = vmatpush1.bf16.msra.mxu0 %v1444
        %1738 = vmatprep.subr.bf16.mxu0 %v1439
        %1739 = vmatpush1.bf16.msra.mxu0 %v1438
        %1740 = vmatprep.subr.bf16.mxu0 %v1433
        %1741 = vmatpush1.bf16.msra.mxu0 %v1432
        %1742 = vmatprep.subr.bf16.mxu0 %v1523
        %1743 = vmatpush2.bf16.msra.mxu0 %v1522
        %1744 = vmatprep.subr.bf16.mxu0 %v1517
        %1745 = vmatpush2.bf16.msra.mxu0 %v1516
        %1746 = vmatprep.subr.bf16.mxu0 %v1511
        %1747 = vmatpush2.bf16.msra.mxu0 %v1510
        %1748 = vmatprep.subr.bf16.mxu0 %v1505
        %1749 = vmatpush2.bf16.msra.mxu0 %v1504
        %1750 = vmatprep.subr.bf16.mxu0 %v1499
        %1751 = vmatpush2.bf16.msra.mxu0 %v1498
        %1752 = vmatprep.subr.bf16.mxu0 %v1493
        %1753 = vmatpush2.bf16.msra.mxu0 %v1492
        %1754 = vmatprep.subr.bf16.mxu0 %v1487
        %1755 = vmatpush2.bf16.msra.mxu0 %v1486
        %1756 = vmatprep.subr.bf16.mxu0 %v1481
        %1757 = vmatpush2.bf16.msra.mxu0 %v1480
        %1758 = vmatprep.mubr.bf16.mxu0 %v494
        %1759 = vmatmul.mubr.bf16.gmra.mxu0 %v493
        %v1760 = vpop.f32.mrf.mxu0
        %v1761 = vadd.f32 %v1122, %v1760
        %v1762 = vpop.f32.mrf.mxu0
        %v1763 = vadd.f32 %v1124, %v1762
        %v1764 = vpop.f32.mrf.mxu0
        %v1765 = vadd.f32 %v1126, %v1764
        %v1766 = vpop.f32.mrf.mxu0
        %v1767 = vadd.f32 %v1128, %v1766
        %1768 = vmatprep.mubr.bf16.mxu0 %v496
        %1769 = vmatmul.mubr.bf16.gmra.mxu0 %v495
        %v1770 = vpop.f32.mrf.mxu0
        %v1771 = vadd.f32 %v1132, %v1770
        %v1772 = vpop.f32.mrf.mxu0
        %v1773 = vadd.f32 %v1134, %v1772
        %v1774 = vpop.f32.mrf.mxu0
        %v1775 = vadd.f32 %v1136, %v1774
        %v1776 = vpop.f32.mrf.mxu0
        %v1777 = vadd.f32 %v1138, %v1776
        %1778 = vdwg.mxu0
        %v1779 = vmul.f32 %v1655, %v1655
        %v1780 = vmul.f32 %v1657, %v1657
        %v1781 = vmul.f32 %v1708, %v1708
        %v1782 = vmul.f32 %v1659, %v1659
        %v1783 = vmul.f32 %v1661, %v1661
        %v1784 = vmul.f32 %v1712, %v1712
        %v1785 = vmul.f32 %v1665, %v1665
        %v1786 = vmul.f32 %v1667, %v1667
        %v1787 = vmul.f32 %v1718, %v1718
        %v1788 = vmul.f32 %v1669, %v1669
        %v1789 = vmul.f32 %v1671, %v1671
        %v1790 = vmul.f32 %v1722, %v1722
        %v1791 = vmul.f32 %v1710, %v1710
        %v1792 = vmul.f32 %v1761, %v1761
        %v1793 = vmul.f32 %v1763, %v1763
        %v1794 = vmul.f32 %v1714, %v1714
        %v1795 = vmul.f32 %v1765, %v1765
        %v1796 = vmul.f32 %v1767, %v1767
        %v1797 = vmul.f32 %v1720, %v1720
        %v1798 = vmul.f32 %v1771, %v1771
        %v1799 = vmul.f32 %v1773, %v1773
        %v1800 = vmul.f32 %v1724, %v1724
        %v1801 = vmul.f32 %v1775, %v1775
        %v1802 = vmul.f32 %v1777, %v1777
        %v1803 = vadd.f32 %v1779, %v1791
        %v1804 = vadd.f32 %v1780, %v1792
        %v1805 = vadd.f32 %v1781, %v1793
        %v1806 = vadd.f32 %v1782, %v1794
        %v1807 = vadd.f32 %v1783, %v1795
        %v1808 = vadd.f32 %v1784, %v1796
        %v1809 = vadd.f32 %v1785, %v1797
        %v1810 = vadd.f32 %v1786, %v1798
        %v1811 = vadd.f32 %v1787, %v1799
        %v1812 = vadd.f32 %v1788, %v1800
        %v1813 = vadd.f32 %v1789, %v1801
        %v1814 = vadd.f32 %v1790, %v1802
        %v1815 = vmax.f32 %v1803, 1e-10
        %v1816 = vmax.f32 %v1804, 1e-10
        %v1817 = vmax.f32 %v1805, 1e-10
        %v1818 = vmax.f32 %v1806, 1e-10
        %v1819 = vmax.f32 %v1807, 1e-10
        %v1820 = vmax.f32 %v1808, 1e-10
        %v1821 = vmax.f32 %v1809, 1e-10
        %v1822 = vmax.f32 %v1810, 1e-10
        %v1823 = vmax.f32 %v1811, 1e-10
        %v1824 = vmax.f32 %v1812, 1e-10
        %v1825 = vmax.f32 %v1813, 1e-10
        %v1826 = vmax.f32 %v1814, 1e-10
        %v1827 = vlog2.pop %v1815
        %v1828 = vmul.f32 %v1827, 0.6931472
        %v1829 = vlog2.pop %v1816
        %v1830 = vmul.f32 %v1829, 0.6931472
        %v1831 = vlog2.pop %v1817
        %v1832 = vmul.f32 %v1831, 0.6931472
        %v1833 = vlog2.pop %v1818
        %v1834 = vmul.f32 %v1833, 0.6931472
        %v1835 = vlog2.pop %v1819
        %v1836 = vmul.f32 %v1835, 0.6931472
        %v1837 = vlog2.pop %v1820
        %v1838 = vmul.f32 %v1837, 0.6931472
        %v1839 = vlog2.pop %v1821
        %v1840 = vmul.f32 %v1839, 0.6931472
        %v1841 = vlog2.pop %v1822
        %v1842 = vmul.f32 %v1841, 0.6931472
        %v1843 = vlog2.pop %v1823
        %v1844 = vmul.f32 %v1843, 0.6931472
        %v1845 = vlog2.pop %v1824
        %v1846 = vmul.f32 %v1845, 0.6931472
        %v1847 = vlog2.pop %v1825
        %v1848 = vmul.f32 %v1847, 0.6931472
        %v1849 = vlog2.pop %v1826
        %v1850 = vmul.f32 %v1849, 0.6931472
        %v1851 = vlaneseq
        %v1852 = vand.u32 %v1851, 127
        %v1853 = vadd.s32 %v1852, 128
        %v1854 = vadd.s32 %v1852, 256
        %vm1855 = vcmp.lt.s32.totalorder %v1852, 257
        %vm1856 = vcmp.lt.s32.totalorder %v1853, 257
        %vm1857 = vcmp.lt.s32.totalorder %v1854, 257
        %v1858 = vsel %vm1855, 1, 0
        %v1859 = vsel %vm1856, 1, 0
        %v1860 = vsel %vm1857, 1, 0
        %vm1861 = vcmp.eq.s32.totalorder %v1858, 1
        %vm1862 = vcmp.eq.s32.totalorder %v1859, 1
        %vm1863 = vcmp.eq.s32.totalorder %v1860, 1
        %v1864 = vsel %vm1861, %v1828, 0.0
        %v1865 = vsel %vm1862, %v1830, 0.0
        %v1866 = vsel %vm1863, %v1832, 0.0
        %v1867 = vsel %vm1861, %v1834, 0.0
        %v1868 = vsel %vm1862, %v1836, 0.0
        %v1869 = vsel %vm1863, %v1838, 0.0
        %v1870 = vsel %vm1861, %v1840, 0.0
        %v1871 = vsel %vm1862, %v1842, 0.0
        %v1872 = vsel %vm1863, %v1844, 0.0
        %v1873 = vsel %vm1861, %v1846, 0.0
        %v1874 = vsel %vm1862, %v1848, 0.0
        %v1875 = vsel %vm1863, %v1850, 0.0
        %v1876 = vld [vmem:[%s222] sm:$0xff]
        %v1877 = vld [vmem:[%s222 + $0x8] sm:$0xff]
        %v1878 = vmul.f32 %v1864, %v1867
        %v1879 = vmul.f32 %v1865, %v1868
        %v1880 = vmul.f32 %v1866, %v1869
        %v1881 = vmul.f32 %v1870, %v1873
        %v1882 = vmul.f32 %v1871, %v1874
        %v1883 = vmul.f32 %v1872, %v1875
        %v1884 = vadd.f32 %v1878, %v1879
        %v1885 = vadd.f32 %v1884, %v1880
        %1886 = vadd.xlane.f32.xlu0 %v1885
        %v1887 = vpop.xlane.xlu0 %1886
        %v1888 = vadd.f32 %v1881, %v1882
        %v1889 = vadd.f32 %v1888, %v1883
        %1890 = vadd.xlane.f32.xlu0 %v1889
        %v1891 = vpop.xlane.xlu0 %1890
        %v1892 = vmul.f32 %v1887, %v1876
        %v1893 = vmul.f32 %v1891, %v1877
        %vm1894 = vcmask 7168
        %v1895 = vsel %vm1894, %v1892, 0.0
        %v1896 = vrot.slane %v1895, 4
        %v1897 = vadd.f32 %v1895, %v1896
        %v1898 = vrot.slane %v1897, 2
        %v1899 = vadd.f32 %v1897, %v1898
        %v1900 = vrot.slane %v1899, 1
        %v1901 = vadd.f32 %v1899, %v1900
        %v1902 = vsel %vm1894, %v1893, 0.0
        %v1903 = vrot.slane %v1902, 4
        %v1904 = vadd.f32 %v1902, %v1903
        %v1905 = vrot.slane %v1904, 2
        %v1906 = vadd.f32 %v1904, %v1905
        %v1907 = vrot.slane %v1906, 1
        %v1908 = vadd.f32 %v1906, %v1907
        %v1909 = vmul.f32 %v1864, %v1864
        %v1910 = vmul.f32 %v1865, %v1865
        %v1911 = vmul.f32 %v1866, %v1866
        %v1912 = vmul.f32 %v1870, %v1870
        %v1913 = vmul.f32 %v1871, %v1871
        %v1914 = vmul.f32 %v1872, %v1872
        %v1915 = vadd.f32 %v1909, %v1910
        %v1916 = vadd.f32 %v1915, %v1911
        %1917 = vadd.xlane.f32.xlu0 %v1916
        %v1918 = vpop.xlane.xlu0 %1917
        %v1919 = vadd.f32 %v1912, %v1913
        %v1920 = vadd.f32 %v1919, %v1914
        %1921 = vadd.xlane.f32.xlu0 %v1920
        %v1922 = vpop.xlane.xlu0 %1921
        %v1923 = vmul.f32 %v1918, %v1876
        %v1924 = vmul.f32 %v1922, %v1877
        %v1925 = vsel %vm1894, %v1923, 0.0
        %v1926 = vrot.slane %v1925, 4
        %v1927 = vadd.f32 %v1925, %v1926
        %v1928 = vrot.slane %v1927, 2
        %v1929 = vadd.f32 %v1927, %v1928
        %v1930 = vrot.slane %v1929, 1
        %v1931 = vadd.f32 %v1929, %v1930
        %v1932 = vsel %vm1894, %v1924, 0.0
        %v1933 = vrot.slane %v1932, 4
        %v1934 = vadd.f32 %v1932, %v1933
        %v1935 = vrot.slane %v1934, 2
        %v1936 = vadd.f32 %v1934, %v1935
        %v1937 = vrot.slane %v1936, 1
        %v1938 = vadd.f32 %v1936, %v1937
        %v1939 = vmul.f32 %v1867, %v1867
        %v1940 = vmul.f32 %v1868, %v1868
        %v1941 = vmul.f32 %v1869, %v1869
        %v1942 = vmul.f32 %v1873, %v1873
        %v1943 = vmul.f32 %v1874, %v1874
        %v1944 = vmul.f32 %v1875, %v1875
        %v1945 = vadd.f32 %v1939, %v1940
        %v1946 = vadd.f32 %v1945, %v1941
        %1947 = vadd.xlane.f32.xlu0 %v1946
        %v1948 = vpop.xlane.xlu0 %1947
        %v1949 = vadd.f32 %v1942, %v1943
        %v1950 = vadd.f32 %v1949, %v1944
        %1951 = vadd.xlane.f32.xlu0 %v1950
        %v1952 = vpop.xlane.xlu0 %1951
        %v1953 = vmul.f32 %v1948, %v1876
        %v1954 = vmul.f32 %v1952, %v1877
        %v1955 = vsel %vm1894, %v1953, 0.0
        %v1956 = vrot.slane %v1955, 4
        %v1957 = vadd.f32 %v1955, %v1956
        %v1958 = vrot.slane %v1957, 2
        %v1959 = vadd.f32 %v1957, %v1958
        %v1960 = vrot.slane %v1959, 1
        %v1961 = vadd.f32 %v1959, %v1960
        %v1962 = vsel %vm1894, %v1954, 0.0
        %v1963 = vrot.slane %v1962, 4
        %v1964 = vadd.f32 %v1962, %v1963
        %v1965 = vrot.slane %v1964, 2
        %v1966 = vadd.f32 %v1964, %v1965
        %v1967 = vrot.slane %v1966, 1
        %v1968 = vadd.f32 %v1966, %v1967
        %v1969 = vrcp.pop %v1931
        %v1970 = vmul.f32 %v1901, %v1969
        %v1971 = vrcp.pop %v1938
        %v1972 = vmul.f32 %v1908, %v1971
        %1974 = vset.pattern.permute.xlu0 0
        %1975 = vperm.xlu0 %1974, %v1970
        %v1976 = vpop.permute.xlu0 %1975
        %1979 = vset.pattern.permute.xlu0 0
        %1980 = vperm.xlu0 %1979, %v1972
        %v1981 = vpop.permute.xlu0 %1980
        %v1983 = vmul.f32 %v1976, %v1864
        %v1984 = vmul.f32 %v1976, %v1865
        %v1985 = vmul.f32 %v1976, %v1866
        %v1986 = vmul.f32 %v1981, %v1870
        %v1987 = vmul.f32 %v1981, %v1871
        %v1988 = vmul.f32 %v1981, %v1872
        %v1989 = vsub.f32 %v1867, %v1983
        %v1990 = vsub.f32 %v1868, %v1984
        %v1991 = vsub.f32 %v1869, %v1985
        %v1992 = vsub.f32 %v1873, %v1986
        %v1993 = vsub.f32 %v1874, %v1987
        %v1994 = vsub.f32 %v1875, %v1988
        %v1995 = vmul.f32 %v1989, %v1989
        %v1996 = vmul.f32 %v1990, %v1990
        %v1997 = vmul.f32 %v1991, %v1991
        %v1998 = vmul.f32 %v1992, %v1992
        %v1999 = vmul.f32 %v1993, %v1993
        %v2000 = vmul.f32 %v1994, %v1994
        %v2001 = vadd.f32 %v1995, %v1996
        %v2002 = vadd.f32 %v2001, %v1997
        %2003 = vadd.xlane.f32.xlu0 %v2002
        %v2004 = vpop.xlane.xlu0 %2003
        %v2005 = vadd.f32 %v1998, %v1999
        %v2006 = vadd.f32 %v2005, %v2000
        %2007 = vadd.xlane.f32.xlu0 %v2006
        %v2008 = vpop.xlane.xlu0 %2007
        %v2009 = vmul.f32 %v2004, %v1876
        %v2010 = vmul.f32 %v2008, %v1877
        %v2011 = vsel %vm1894, %v2009, 0.0
        %v2012 = vrot.slane %v2011, 4
        %v2013 = vadd.f32 %v2011, %v2012
        %v2014 = vrot.slane %v2013, 2
        %v2015 = vadd.f32 %v2013, %v2014
        %v2016 = vrot.slane %v2015, 1
        %v2017 = vadd.f32 %v2015, %v2016
        %v2018 = vsel %vm1894, %v2010, 0.0
        %v2019 = vrot.slane %v2018, 4
        %v2020 = vadd.f32 %v2018, %v2019
        %v2021 = vrot.slane %v2020, 2
        %v2022 = vadd.f32 %v2020, %v2021
        %v2023 = vrot.slane %v2022, 1
        %v2024 = vadd.f32 %v2022, %v2023
        %v2025 = vrcp.pop %v1961
        %v2026 = vmul.f32 %v2017, %v2025
        %v2027 = vrcp.pop %v1968
        %v2028 = vmul.f32 %v2024, %v2027
        %v2029 = vlog2.pop %v2026
        %v2030 = vmul.f32 %v2029, 0.6931472
        %v2031 = vlog2.pop %v2028
        %v2032 = vmul.f32 %v2031, 0.6931472
        %v2033 = vmul.f32 %v2030, 0.5
        %v2034 = vmul.f32 %v2032, 0.5
        %vm2037 = vcmask 1041409
        %v2038 = vsel %vm2037, %v2034, %v2033
        %vm2040 = vcmask 1024
        %2041 = vst.msk [vmem:[%s227] sm:$0x3] %vm2040, %v2038
        %p2042 = scmp.lt.s32.totalorder %s18, 1
        %s2043 = scalar_select %p2042, %s18, 1
        %s2044 = smul.addr %s2043, 2
        %s2045 = scalar_lea.vmem %s3, %s2044
        // Predicated region
        $region41: #{tpu_custom_call.1} parent=31 // pred_check
          %p2046 = pneg %p109
        $region42: #{tpu_custom_call.1} parent=31 // pred_check_branch
          %2048 = sbr.rel (%p2046) target = $region44
        $region43: #{tpu_custom_call.1} parent=31 // pred_region
          _
        $region44: #{tpu_custom_call.1} parent=31 // pred_fallthru
          _
      $region32: #{tpu_custom_call.1} parent=5 // pred_fallthru
        _
      %p2049 = scmp.le.s32.totalorder 2, %s13
      // Predicated region
      $region45: #{tpu_custom_call.1} parent=5 // pred_check
        %p2050 = pneg %p2049
      $region46: #{tpu_custom_call.1} parent=5 // pred_check_branch
        %2052 = sbr.rel (%p2050) target = $region48
      $region47: #{tpu_custom_call.1} parent=5 // pred_region
        %s2053 = ssub.s32 %s13, 2
        // Predicated region
        $region49: #{tpu_custom_call.1} parent=47 // pred_check
          %p2054 = pneg %p115
        $region50: #{tpu_custom_call.1} parent=47 // pred_check_branch
          %2056 = sbr.rel (%p2054) target = $region52
        $region51: #{tpu_custom_call.1} parent=47 // pred_region
          %p2057 = scmp.lt.s32.totalorder %s19, 1
          %s2058 = scalar_select %p2057, %s19, 1
          %s2059 = smul.addr %s2058, 2
          %s2060 = scalar_lea.vmem %s3, %s2059
        $region52: #{tpu_custom_call.1} parent=47 // pred_fallthru
          _
      $region48: #{tpu_custom_call.1} parent=5 // pred_fallthru
        _
    $region6: #{tpu_custom_call.1} parent=1 // loop_footer
      %s17 = sadd.s32 1, %s13
    $region7: #{tpu_custom_call.1} parent=1 // loop_footer_branch
      %12 = sbr.rel target = $region3
    $region8: #{tpu_custom_call.1} parent=1 // loop_exit
      _
    %2061 = vsyncpa [#allocation3], 1
    %s2062 = scalar_lea.sflag [#allocation3], 1
    %2063 = vsyncpa %s2062, 1
    %2064 = vsyncpa [#allocation5], 1

</llo_original>
